<compile_context>
chip_gen: v5e
topology: v5e:2x2
jax: 0.10.0
libtpu: 0.0.40
codegen_flags: <defaults>
</compile_context>

<pallas_src>
import math

import jax
import jax.numpy as jnp
import numpy as np
from jax.experimental import pallas as pl
from jax.experimental.pallas import tpu as pltpu


# ----------------------------------------------------------------------------- kernel
def _dcgru_kernel(supp_ref, x_ref, h_ref,
                  wxr_ref, whr_ref, wxu_ref, whu_ref, wxc_ref, whc_ref,
                  br_ref, bu_ref, bc_ref, out_ref):
    f32, bf16 = jnp.float32, jnp.bfloat16

    supp = supp_ref[...]            # (N, N) f32, resident across the batch grid
    x = x_ref[0]                    # (N, Din_p) f32   (zero-padded channels)
    h = h_ref[0]                    # (N, U)     f32
    Kp1 = wxr_ref.shape[0]          # max_diffusion_step + 1 (static)

    def cheb_terms(t0):
        """[T_0, T_1, ..., T_K] with T_0=Z, T_1=S Z, T_k=2 S T_{k-1} - T_{k-2}.
        Recurrence kept fully in f32 so error does not compound with K."""
        terms = [t0]
        if Kp1 > 1:
            t1 = jnp.dot(supp, t0, preferred_element_type=f32)
            terms.append(t1)
            tk1, tk2 = t1, t0
            for _ in range(2, Kp1):
                t2 = 2.0 * jnp.dot(supp, tk1, preferred_element_type=f32) - tk2
                terms.append(t2)
                tk1, tk2 = t2, tk1
        return terms

    # x-side diffusion is computed once and reused by all three projections.
    tx = cheb_terms(x)
    th = cheb_terms(h)
    tx_b = [t.astype(bf16) for t in tx]     # cast once for the MXU projections
    th_b = [t.astype(bf16) for t in th]

    def project(terms_x, terms_h, wx_ref, wh_ref, b_ref):
        """sum_k (Tx_k @ Wx_k + Th_k @ Wh_k) + bias, f32 accumulation, no concats."""
        acc = b_ref[...]                                    # (1, U), broadcasts
        for k in range(Kp1):                                # static unroll
            acc = acc + jnp.dot(terms_x[k], wx_ref[k], preferred_element_type=f32)
            acc = acc + jnp.dot(terms_h[k], wh_ref[k], preferred_element_type=f32)
        return acc

    # r / u gates: gconv([x, h]) with bias_start = 1.0; separate weight slabs so the
    # r/u split never slices mid-vreg.
    r = jax.nn.sigmoid(project(tx_b, th_b, wxr_ref, whr_ref, br_ref))
    u = jax.nn.sigmoid(project(tx_b, th_b, wxu_ref, whu_ref, bu_ref))

    # candidate: gconv([x, r*h]) with bias_start = 0.0; only the state-side diffusion
    # has to be recomputed (diffusion of r*h != r * diffusion(h)).
    trh = cheb_terms(r * h)
    trh_b = [t.astype(bf16) for t in trh]
    c = jnp.tanh(project(tx_b, trh_b, wxc_ref, whc_ref, bc_ref))

    # GRU blend in f32; output is (N, U) per batch (lane-dense output only matters at
    # production B*N*U — negligible for this 4 KiB output).
    out_ref[0] = u * h + (1.0 - u) * c


# ----------------------------------------------------------------------------- params
def make_params(key, num_nodes, input_dim, num_units, max_diffusion_step):
    """Deterministic synthetic parameters matching DCGRUCell's LayerParams shapes."""
    F = input_dim + num_units
    Kp1 = max_diffusion_step + 1
    k1, k2 = jax.random.split(key)

    def xavier_normal(k, shape):
        fan_in, fan_out = shape
        std = math.sqrt(2.0 / (fan_in + fan_out))
        return std * jax.random.normal(k, shape, dtype=jnp.float32)

    return dict(
        W_ru=xavier_normal(k1, (F * Kp1, 2 * num_units)),   # gconv weight (r|u)
        W_c=xavier_normal(k2, (F * Kp1, num_units)),        # gconv weight (candidate)
        b_ru=jnp.full((2 * num_units,), 1.0, jnp.float32),  # bias_start = 1.0
        b_c=jnp.zeros((num_units,), jnp.float32),           # bias_start = 0.0
    )


# ----------------------------------------------------------------------------- wrapper
def dcgru_forward(inputs, hx, adj, params, *, num_nodes, input_dim, num_units,
                  max_diffusion_step):
    """inputs: (B, N*input_dim), hx: (B, N*num_units), adj: (N, N). Returns (B, N*U)."""
    B = inputs.shape[0]
    N, Din, U = num_nodes, input_dim, num_units
    Kp1 = max_diffusion_step + 1
    F = Din + U
    Din_p = max(8, -(-Din // 8) * 8)        # pad x channels to a sublane multiple

    x3 = inputs.reshape(B, N, Din).astype(jnp.float32)
    x3 = jnp.pad(x3, ((0, 0), (0, 0), (0, Din_p - Din)))
    h3 = hx.reshape(B, N, U).astype(jnp.float32)

    # Support (depends only on adj): supp = (D^-1 (A+I)).T, matching
    # _calculate_random_walk_matrix(adj).t() including the isinf -> 0 handling.
    a = adj.astype(jnp.float32) + jnp.eye(N, dtype=jnp.float32)
    d_inv = 1.0 / jnp.sum(a, axis=1)
    d_inv = jnp.where(jnp.isinf(d_inv), 0.0, d_inv)
    supp = (d_inv[:, None] * a).T                            # (N, N) f32

    # Repack reference weights (row index = f*Kp1 + k, columns = [r | u]) into per-k
    # slabs split by channel block (x vs h) and by gate (r vs u vs c). Mathematically
    # identical; removes all in-kernel concats and mid-vreg output slices.
    w_ru = params['W_ru'].reshape(F, Kp1, 2 * U)
    w_c = params['W_c'].reshape(F, Kp1, U)

    def blk(w, pad_rows):
        w = jnp.transpose(w, (1, 0, 2))                      # (Kp1, C, O)
        w = jnp.pad(w, ((0, 0), (0, pad_rows), (0, 0)))
        return w.astype(jnp.bfloat16)

    wxr = blk(w_ru[:Din, :, :U], Din_p - Din)                # (Kp1, Din_p, U)
    whr = blk(w_ru[Din:, :, :U], 0)                          # (Kp1, U, U)
    wxu = blk(w_ru[:Din, :, U:], Din_p - Din)
    whu = blk(w_ru[Din:, :, U:], 0)
    wxc = blk(w_c[:Din], Din_p - Din)
    whc = blk(w_c[Din:], 0)
    br = params['b_ru'][:U].reshape(1, U).astype(jnp.float32)
    bu = params['b_ru'][U:].reshape(1, U).astype(jnp.float32)
    bc = params['b_c'].reshape(1, U).astype(jnp.float32)

    res2 = lambda b: (0, 0)        # resident 2-D operand (constant index_map)
    res3 = lambda b: (0, 0, 0)     # resident 3-D operand
    bat = lambda b: (b, 0, 0)      # streamed per-batch block

    out = pl.pallas_call(
        _dcgru_kernel,
        out_shape=jax.ShapeDtypeStruct((B, N, U), jnp.float32),
        grid=(B,),
        in_specs=[
            pl.BlockSpec((N, N), res2),            # supp (resident)
            pl.BlockSpec((1, N, Din_p), bat),      # x_b
            pl.BlockSpec((1, N, U), bat),          # h_b
            pl.BlockSpec((Kp1, Din_p, U), res3),   # Wx_r
            pl.BlockSpec((Kp1, U, U), res3),       # Wh_r
            pl.BlockSpec((Kp1, Din_p, U), res3),   # Wx_u
            pl.BlockSpec((Kp1, U, U), res3),       # Wh_u
            pl.BlockSpec((Kp1, Din_p, U), res3),   # Wx_c
            pl.BlockSpec((Kp1, U, U), res3),       # Wh_c
            pl.BlockSpec((1, U), res2),            # b_r
            pl.BlockSpec((1, U), res2),            # b_u
            pl.BlockSpec((1, U), res2),            # b_c
        ],
        out_specs=pl.BlockSpec((1, N, U), bat),
        compiler_params=pltpu.CompilerParams(
            dimension_semantics=("parallel",)),    # batch axis: 2 TCs on v7x
    )(supp, x3, h3, wxr, whr, wxu, whu, wxc, whc, br, bu, bc)

    return out.reshape(B, N * U)                   # free row-major reshape


# ----------------------------------------------------------------------------- reference
def reference_forward(inputs, hx, adj, params, *, num_nodes, num_units,
                      max_diffusion_step):
    """Literal plain-JAX (f32) translation of DCGRUCell.forward (single RW support)."""
    N, U, K = num_nodes, num_units, max_diffusion_step
    a = adj + jnp.eye(N, dtype=jnp.float32)
    d = a.sum(axis=1)
    d_inv = 1.0 / d
    d_inv = jnp.where(jnp.isinf(d_inv), 0.0, d_inv)
    supp = (jnp.diag(d_inv) @ a).T

    def gconv(inp, state, W, b):
        B = inp.shape[0]
        x = jnp.concatenate([inp.reshape(B, N, -1), state.reshape(B, N, -1)], axis=2)
        F = x.shape[2]
        x0 = x.transpose(1, 2, 0).reshape(N, F * B)
        mats = [x0]
        if K > 0:
            x1 = supp @ x0
            mats.append(x1)
            xk_1, xk_2 = x1, x0
            for _ in range(2, K + 1):
                x2 = 2.0 * (supp @ xk_1) - xk_2
                mats.append(x2)
                xk_1, xk_2 = x2, xk_1
        xs = jnp.stack(mats, 0).reshape(K + 1, N, F, B).transpose(3, 1, 2, 0)
        xs = xs.reshape(B * N, F * (K + 1))
        out = xs @ W + b
        return out.reshape(B, N * W.shape[1])

    value = jax.nn.sigmoid(gconv(inputs, hx, params['W_ru'], params['b_ru']))
    value = value.reshape(-1, N, 2 * U)
    r = value[..., :U].reshape(-1, N * U)
    u = value[..., U:].reshape(-1, N * U)
    c = jnp.tanh(gconv(inputs, r * hx, params['W_c'], params['b_c']))
    return u * hx + (1.0 - u) * c


# ----------------------------------------------------------------------------- main
if __name__ == "__main__":
    # Shapes consistent with DCGRUCell: B=2 batch, 16 nodes, input_dim=4,
    # num_units=32, max_diffusion_step=2.
    B, N, Din, U, K = 2, 16, 4, 32, 2

    key = jax.random.PRNGKey(0)
    kx, kh, ka, kp = jax.random.split(key, 4)
    inputs = jax.random.normal(kx, (B, N * Din), dtype=jnp.float32)
    hx = jax.random.normal(kh, (B, N * U), dtype=jnp.float32)
    raw = jax.random.uniform(ka, (N, N), dtype=jnp.float32)
    adj = jnp.where(raw > 0.6, raw, 0.0)  # sparse-ish nonnegative adjacency

    params = make_params(kp, N, Din, U, K)

    out = dcgru_forward(inputs, hx, adj, params, num_nodes=N, input_dim=Din,
                        num_units=U, max_diffusion_step=K)
    out = jax.block_until_ready(out)

    ref = reference_forward(inputs, hx, adj, params, num_nodes=N, num_units=U,
                            max_diffusion_step=K)
    ref = jax.block_until_ready(ref)

    assert out.shape == (B, N * U)
    # f32 Chebyshev recurrence + bf16-operand/f32-accum projections -> comfortably
    # inside this tolerance.
    np.testing.assert_allclose(np.asarray(out), np.asarray(ref), rtol=2e-2, atol=2e-2)
    print("KERNEL_OK")
</pallas_src>

<mosaic_0001>
module attributes {stable_mosaic.version = 11 : i64} {
  func.func @_dcgru_kernel(%arg0: i32, %arg1: memref<16x16xf32, #tpu.memory_space<vmem>>, %arg2: memref<1x16x8xf32, #tpu.memory_space<vmem>>, %arg3: memref<1x16x32xf32, #tpu.memory_space<vmem>>, %arg4: memref<3x8x32xbf16, #tpu.memory_space<vmem>>, %arg5: memref<3x32x32xbf16, #tpu.memory_space<vmem>>, %arg6: memref<3x8x32xbf16, #tpu.memory_space<vmem>>, %arg7: memref<3x32x32xbf16, #tpu.memory_space<vmem>>, %arg8: memref<3x8x32xbf16, #tpu.memory_space<vmem>>, %arg9: memref<3x32x32xbf16, #tpu.memory_space<vmem>>, %arg10: memref<1x32xf32, #tpu.memory_space<vmem>>, %arg11: memref<1x32xf32, #tpu.memory_space<vmem>>, %arg12: memref<1x32xf32, #tpu.memory_space<vmem>>, %arg13: memref<1x16x32xf32, #tpu.memory_space<vmem>>) attributes {dimension_semantics = [#tpu.dimension_semantics<parallel>], iteration_bounds = array<i64: 2>, scalar_prefetch = 0 : i64, scratch_operands = 0 : i64, tpu.core_type = #tpu.core_type<tc>, window_params = [{pipeline_mode = #tpu.pipeline_mode<synchronous>, transform_indices = @transform_0, window_bounds = array<i64: 16, 16>}, {transform_indices = @transform_1, window_bounds = array<i64: 1, 16, 8>}, {transform_indices = @transform_2, window_bounds = array<i64: 1, 16, 32>}, {pipeline_mode = #tpu.pipeline_mode<synchronous>, transform_indices = @transform_3, window_bounds = array<i64: 3, 8, 32>}, {pipeline_mode = #tpu.pipeline_mode<synchronous>, transform_indices = @transform_4, window_bounds = array<i64: 3, 32, 32>}, {pipeline_mode = #tpu.pipeline_mode<synchronous>, transform_indices = @transform_5, window_bounds = array<i64: 3, 8, 32>}, {pipeline_mode = #tpu.pipeline_mode<synchronous>, transform_indices = @transform_6, window_bounds = array<i64: 3, 32, 32>}, {pipeline_mode = #tpu.pipeline_mode<synchronous>, transform_indices = @transform_7, window_bounds = array<i64: 3, 8, 32>}, {pipeline_mode = #tpu.pipeline_mode<synchronous>, transform_indices = @transform_8, window_bounds = array<i64: 3, 32, 32>}, {pipeline_mode = #tpu.pipeline_mode<synchronous>, transform_indices = @transform_9, window_bounds = array<i64: 1, 32>}, {pipeline_mode = #tpu.pipeline_mode<synchronous>, transform_indices = @transform_10, window_bounds = array<i64: 1, 32>}, {pipeline_mode = #tpu.pipeline_mode<synchronous>, transform_indices = @transform_11, window_bounds = array<i64: 1, 32>}, {transform_indices = @transform_12, window_bounds = array<i64: 1, 16, 32>}]} {
    %c0 = arith.constant 0 : index
    %c0_0 = arith.constant 0 : index
    %0 = vector.load %arg1[%c0, %c0_0] : memref<16x16xf32, #tpu.memory_space<vmem>>, vector<16x16xf32>
    %c0_1 = arith.constant 0 : index
    %c0_2 = arith.constant 0 : index
    %c0_3 = arith.constant 0 : index
    %1 = vector.load %arg2[%c0_1, %c0_2, %c0_3] : memref<1x16x8xf32, #tpu.memory_space<vmem>>, vector<1x16x8xf32>
    %2 = vector.shape_cast %1 : vector<1x16x8xf32> to vector<16x8xf32>
    %c0_4 = arith.constant 0 : index
    %c0_5 = arith.constant 0 : index
    %c0_6 = arith.constant 0 : index
    %3 = vector.load %arg3[%c0_4, %c0_5, %c0_6] : memref<1x16x32xf32, #tpu.memory_space<vmem>>, vector<1x16x32xf32>
    %4 = vector.shape_cast %3 : vector<1x16x32xf32> to vector<16x32xf32>
    %cst = arith.constant dense<0.000000e+00> : vector<16x8xf32>
    %5 = tpu.matmul %0, %2, %cst {dimension_numbers = #tpu.dot_dimension_numbers<[1], [0], [0], [1], [0, 0, 1, 1], [], []>} : vector<16x16xf32>, vector<16x8xf32>, vector<16x8xf32> -> vector<16x8xf32>
    %cst_7 = arith.constant dense<0.000000e+00> : vector<16x8xf32>
    %6 = tpu.matmul %0, %5, %cst_7 {dimension_numbers = #tpu.dot_dimension_numbers<[1], [0], [0], [1], [0, 0, 1, 1], [], []>} : vector<16x16xf32>, vector<16x8xf32>, vector<16x8xf32> -> vector<16x8xf32>
    %cst_8 = arith.constant 2.000000e+00 : f32
    %7 = vector.broadcast %cst_8 : f32 to vector<16x8xf32>
    %8 = arith.mulf %7, %6 : vector<16x8xf32>
    %9 = arith.subf %8, %2 : vector<16x8xf32>
    %cst_9 = arith.constant dense<0.000000e+00> : vector<16x32xf32>
    %10 = tpu.matmul %0, %4, %cst_9 {dimension_numbers = #tpu.dot_dimension_numbers<[1], [0], [0], [1], [0, 0, 1, 1], [], []>} : vector<16x16xf32>, vector<16x32xf32>, vector<16x32xf32> -> vector<16x32xf32>
    %cst_10 = arith.constant dense<0.000000e+00> : vector<16x32xf32>
    %11 = tpu.matmul %0, %10, %cst_10 {dimension_numbers = #tpu.dot_dimension_numbers<[1], [0], [0], [1], [0, 0, 1, 1], [], []>} : vector<16x16xf32>, vector<16x32xf32>, vector<16x32xf32> -> vector<16x32xf32>
    %cst_11 = arith.constant 2.000000e+00 : f32
    %12 = vector.broadcast %cst_11 : f32 to vector<16x32xf32>
    %13 = arith.mulf %12, %11 : vector<16x32xf32>
    %14 = arith.subf %13, %4 : vector<16x32xf32>
    %15 = arith.truncf %2 : vector<16x8xf32> to vector<16x8xbf16>
    %16 = arith.truncf %5 : vector<16x8xf32> to vector<16x8xbf16>
    %17 = arith.truncf %9 : vector<16x8xf32> to vector<16x8xbf16>
    %18 = arith.truncf %4 : vector<16x32xf32> to vector<16x32xbf16>
    %19 = arith.truncf %10 : vector<16x32xf32> to vector<16x32xbf16>
    %20 = arith.truncf %14 : vector<16x32xf32> to vector<16x32xbf16>
    %c0_12 = arith.constant 0 : index
    %c0_13 = arith.constant 0 : index
    %21 = vector.load %arg10[%c0_12, %c0_13] : memref<1x32xf32, #tpu.memory_space<vmem>>, vector<1x32xf32>
    %c0_14 = arith.constant 0 : index
    %c0_15 = arith.constant 0 : index
    %c0_16 = arith.constant 0 : index
    %22 = vector.load %arg4[%c0_14, %c0_15, %c0_16] : memref<3x8x32xbf16, #tpu.memory_space<vmem>>, vector<1x8x32xbf16>
    %23 = vector.shape_cast %22 : vector<1x8x32xbf16> to vector<8x32xbf16>
    %cst_17 = arith.constant dense<0.000000e+00> : vector<16x32xf32>
    %24 = tpu.matmul %15, %23, %cst_17 {dimension_numbers = #tpu.dot_dimension_numbers<[1], [0], [0], [1], [0, 0, 1, 1], [], []>} : vector<16x8xbf16>, vector<8x32xbf16>, vector<16x32xf32> -> vector<16x32xf32>
    %25 = vector.broadcast %21 : vector<1x32xf32> to vector<16x32xf32>
    %26 = arith.addf %25, %24 : vector<16x32xf32>
    %c0_18 = arith.constant 0 : index
    %c0_19 = arith.constant 0 : index
    %c0_20 = arith.constant 0 : index
    %27 = vector.load %arg5[%c0_18, %c0_19, %c0_20] : memref<3x32x32xbf16, #tpu.memory_space<vmem>>, vector<1x32x32xbf16>
    %28 = vector.shape_cast %27 : vector<1x32x32xbf16> to vector<32x32xbf16>
    %cst_21 = arith.constant dense<0.000000e+00> : vector<16x32xf32>
    %29 = tpu.matmul %18, %28, %cst_21 {dimension_numbers = #tpu.dot_dimension_numbers<[1], [0], [0], [1], [0, 0, 1, 1], [], []>} : vector<16x32xbf16>, vector<32x32xbf16>, vector<16x32xf32> -> vector<16x32xf32>
    %30 = arith.addf %26, %29 : vector<16x32xf32>
    %c1 = arith.constant 1 : index
    %c0_22 = arith.constant 0 : index
    %c0_23 = arith.constant 0 : index
    %31 = vector.load %arg4[%c1, %c0_22, %c0_23] : memref<3x8x32xbf16, #tpu.memory_space<vmem>>, vector<1x8x32xbf16>
    %32 = vector.shape_cast %31 : vector<1x8x32xbf16> to vector<8x32xbf16>
    %cst_24 = arith.constant dense<0.000000e+00> : vector<16x32xf32>
    %33 = tpu.matmul %16, %32, %cst_24 {dimension_numbers = #tpu.dot_dimension_numbers<[1], [0], [0], [1], [0, 0, 1, 1], [], []>} : vector<16x8xbf16>, vector<8x32xbf16>, vector<16x32xf32> -> vector<16x32xf32>
    %34 = arith.addf %30, %33 : vector<16x32xf32>
    %c1_25 = arith.constant 1 : index
    %c0_26 = arith.constant 0 : index
    %c0_27 = arith.constant 0 : index
    %35 = vector.load %arg5[%c1_25, %c0_26, %c0_27] : memref<3x32x32xbf16, #tpu.memory_space<vmem>>, vector<1x32x32xbf16>
    %36 = vector.shape_cast %35 : vector<1x32x32xbf16> to vector<32x32xbf16>
    %cst_28 = arith.constant dense<0.000000e+00> : vector<16x32xf32>
    %37 = tpu.matmul %19, %36, %cst_28 {dimension_numbers = #tpu.dot_dimension_numbers<[1], [0], [0], [1], [0, 0, 1, 1], [], []>} : vector<16x32xbf16>, vector<32x32xbf16>, vector<16x32xf32> -> vector<16x32xf32>
    %38 = arith.addf %34, %37 : vector<16x32xf32>
    %c2 = arith.constant 2 : index
    %c0_29 = arith.constant 0 : index
    %c0_30 = arith.constant 0 : index
    %39 = vector.load %arg4[%c2, %c0_29, %c0_30] : memref<3x8x32xbf16, #tpu.memory_space<vmem>>, vector<1x8x32xbf16>
    %40 = vector.shape_cast %39 : vector<1x8x32xbf16> to vector<8x32xbf16>
    %cst_31 = arith.constant dense<0.000000e+00> : vector<16x32xf32>
    %41 = tpu.matmul %17, %40, %cst_31 {dimension_numbers = #tpu.dot_dimension_numbers<[1], [0], [0], [1], [0, 0, 1, 1], [], []>} : vector<16x8xbf16>, vector<8x32xbf16>, vector<16x32xf32> -> vector<16x32xf32>
    %42 = arith.addf %38, %41 : vector<16x32xf32>
    %c2_32 = arith.constant 2 : index
    %c0_33 = arith.constant 0 : index
    %c0_34 = arith.constant 0 : index
    %43 = vector.load %arg5[%c2_32, %c0_33, %c0_34] : memref<3x32x32xbf16, #tpu.memory_space<vmem>>, vector<1x32x32xbf16>
    %44 = vector.shape_cast %43 : vector<1x32x32xbf16> to vector<32x32xbf16>
    %cst_35 = arith.constant dense<0.000000e+00> : vector<16x32xf32>
    %45 = tpu.matmul %20, %44, %cst_35 {dimension_numbers = #tpu.dot_dimension_numbers<[1], [0], [0], [1], [0, 0, 1, 1], [], []>} : vector<16x32xbf16>, vector<32x32xbf16>, vector<16x32xf32> -> vector<16x32xf32>
    %46 = arith.addf %42, %45 : vector<16x32xf32>
    %47 = arith.negf %46 : vector<16x32xf32>
    %48 = math.exp %47 : vector<16x32xf32>
    %cst_36 = arith.constant 1.000000e+00 : f32
    %49 = vector.broadcast %cst_36 : f32 to vector<16x32xf32>
    %50 = arith.addf %49, %48 : vector<16x32xf32>
    %51 = arith.divf %49, %50 : vector<16x32xf32>
    %c0_37 = arith.constant 0 : index
    %c0_38 = arith.constant 0 : index
    %52 = vector.load %arg11[%c0_37, %c0_38] : memref<1x32xf32, #tpu.memory_space<vmem>>, vector<1x32xf32>
    %c0_39 = arith.constant 0 : index
    %c0_40 = arith.constant 0 : index
    %c0_41 = arith.constant 0 : index
    %53 = vector.load %arg6[%c0_39, %c0_40, %c0_41] : memref<3x8x32xbf16, #tpu.memory_space<vmem>>, vector<1x8x32xbf16>
    %54 = vector.shape_cast %53 : vector<1x8x32xbf16> to vector<8x32xbf16>
    %cst_42 = arith.constant dense<0.000000e+00> : vector<16x32xf32>
    %55 = tpu.matmul %15, %54, %cst_42 {dimension_numbers = #tpu.dot_dimension_numbers<[1], [0], [0], [1], [0, 0, 1, 1], [], []>} : vector<16x8xbf16>, vector<8x32xbf16>, vector<16x32xf32> -> vector<16x32xf32>
    %56 = vector.broadcast %52 : vector<1x32xf32> to vector<16x32xf32>
    %57 = arith.addf %56, %55 : vector<16x32xf32>
    %c0_43 = arith.constant 0 : index
    %c0_44 = arith.constant 0 : index
    %c0_45 = arith.constant 0 : index
    %58 = vector.load %arg7[%c0_43, %c0_44, %c0_45] : memref<3x32x32xbf16, #tpu.memory_space<vmem>>, vector<1x32x32xbf16>
    %59 = vector.shape_cast %58 : vector<1x32x32xbf16> to vector<32x32xbf16>
    %cst_46 = arith.constant dense<0.000000e+00> : vector<16x32xf32>
    %60 = tpu.matmul %18, %59, %cst_46 {dimension_numbers = #tpu.dot_dimension_numbers<[1], [0], [0], [1], [0, 0, 1, 1], [], []>} : vector<16x32xbf16>, vector<32x32xbf16>, vector<16x32xf32> -> vector<16x32xf32>
    %61 = arith.addf %57, %60 : vector<16x32xf32>
    %c1_47 = arith.constant 1 : index
    %c0_48 = arith.constant 0 : index
    %c0_49 = arith.constant 0 : index
    %62 = vector.load %arg6[%c1_47, %c0_48, %c0_49] : memref<3x8x32xbf16, #tpu.memory_space<vmem>>, vector<1x8x32xbf16>
    %63 = vector.shape_cast %62 : vector<1x8x32xbf16> to vector<8x32xbf16>
    %cst_50 = arith.constant dense<0.000000e+00> : vector<16x32xf32>
    %64 = tpu.matmul %16, %63, %cst_50 {dimension_numbers = #tpu.dot_dimension_numbers<[1], [0], [0], [1], [0, 0, 1, 1], [], []>} : vector<16x8xbf16>, vector<8x32xbf16>, vector<16x32xf32> -> vector<16x32xf32>
    %65 = arith.addf %61, %64 : vector<16x32xf32>
    %c1_51 = arith.constant 1 : index
    %c0_52 = arith.constant 0 : index
    %c0_53 = arith.constant 0 : index
    %66 = vector.load %arg7[%c1_51, %c0_52, %c0_53] : memref<3x32x32xbf16, #tpu.memory_space<vmem>>, vector<1x32x32xbf16>
    %67 = vector.shape_cast %66 : vector<1x32x32xbf16> to vector<32x32xbf16>
    %cst_54 = arith.constant dense<0.000000e+00> : vector<16x32xf32>
    %68 = tpu.matmul %19, %67, %cst_54 {dimension_numbers = #tpu.dot_dimension_numbers<[1], [0], [0], [1], [0, 0, 1, 1], [], []>} : vector<16x32xbf16>, vector<32x32xbf16>, vector<16x32xf32> -> vector<16x32xf32>
    %69 = arith.addf %65, %68 : vector<16x32xf32>
    %c2_55 = arith.constant 2 : index
    %c0_56 = arith.constant 0 : index
    %c0_57 = arith.constant 0 : index
    %70 = vector.load %arg6[%c2_55, %c0_56, %c0_57] : memref<3x8x32xbf16, #tpu.memory_space<vmem>>, vector<1x8x32xbf16>
    %71 = vector.shape_cast %70 : vector<1x8x32xbf16> to vector<8x32xbf16>
    %cst_58 = arith.constant dense<0.000000e+00> : vector<16x32xf32>
    %72 = tpu.matmul %17, %71, %cst_58 {dimension_numbers = #tpu.dot_dimension_numbers<[1], [0], [0], [1], [0, 0, 1, 1], [], []>} : vector<16x8xbf16>, vector<8x32xbf16>, vector<16x32xf32> -> vector<16x32xf32>
    %73 = arith.addf %69, %72 : vector<16x32xf32>
    %c2_59 = arith.constant 2 : index
    %c0_60 = arith.constant 0 : index
    %c0_61 = arith.constant 0 : index
    %74 = vector.load %arg7[%c2_59, %c0_60, %c0_61] : memref<3x32x32xbf16, #tpu.memory_space<vmem>>, vector<1x32x32xbf16>
    %75 = vector.shape_cast %74 : vector<1x32x32xbf16> to vector<32x32xbf16>
    %cst_62 = arith.constant dense<0.000000e+00> : vector<16x32xf32>
    %76 = tpu.matmul %20, %75, %cst_62 {dimension_numbers = #tpu.dot_dimension_numbers<[1], [0], [0], [1], [0, 0, 1, 1], [], []>} : vector<16x32xbf16>, vector<32x32xbf16>, vector<16x32xf32> -> vector<16x32xf32>
    %77 = arith.addf %73, %76 : vector<16x32xf32>
    %78 = arith.negf %77 : vector<16x32xf32>
    %79 = math.exp %78 : vector<16x32xf32>
    %cst_63 = arith.constant 1.000000e+00 : f32
    %80 = vector.broadcast %cst_63 : f32 to vector<16x32xf32>
    %81 = arith.addf %80, %79 : vector<16x32xf32>
    %82 = arith.divf %80, %81 : vector<16x32xf32>
    %83 = arith.mulf %51, %4 : vector<16x32xf32>
    %cst_64 = arith.constant dense<0.000000e+00> : vector<16x32xf32>
    %84 = tpu.matmul %0, %83, %cst_64 {dimension_numbers = #tpu.dot_dimension_numbers<[1], [0], [0], [1], [0, 0, 1, 1], [], []>} : vector<16x16xf32>, vector<16x32xf32>, vector<16x32xf32> -> vector<16x32xf32>
    %cst_65 = arith.constant dense<0.000000e+00> : vector<16x32xf32>
    %85 = tpu.matmul %0, %84, %cst_65 {dimension_numbers = #tpu.dot_dimension_numbers<[1], [0], [0], [1], [0, 0, 1, 1], [], []>} : vector<16x16xf32>, vector<16x32xf32>, vector<16x32xf32> -> vector<16x32xf32>
    %cst_66 = arith.constant 2.000000e+00 : f32
    %86 = vector.broadcast %cst_66 : f32 to vector<16x32xf32>
    %87 = arith.mulf %86, %85 : vector<16x32xf32>
    %88 = arith.subf %87, %83 : vector<16x32xf32>
    %89 = arith.truncf %83 : vector<16x32xf32> to vector<16x32xbf16>
    %90 = arith.truncf %84 : vector<16x32xf32> to vector<16x32xbf16>
    %91 = arith.truncf %88 : vector<16x32xf32> to vector<16x32xbf16>
    %c0_67 = arith.constant 0 : index
    %c0_68 = arith.constant 0 : index
    %92 = vector.load %arg12[%c0_67, %c0_68] : memref<1x32xf32, #tpu.memory_space<vmem>>, vector<1x32xf32>
    %c0_69 = arith.constant 0 : index
    %c0_70 = arith.constant 0 : index
    %c0_71 = arith.constant 0 : index
    %93 = vector.load %arg8[%c0_69, %c0_70, %c0_71] : memref<3x8x32xbf16, #tpu.memory_space<vmem>>, vector<1x8x32xbf16>
    %94 = vector.shape_cast %93 : vector<1x8x32xbf16> to vector<8x32xbf16>
    %cst_72 = arith.constant dense<0.000000e+00> : vector<16x32xf32>
    %95 = tpu.matmul %15, %94, %cst_72 {dimension_numbers = #tpu.dot_dimension_numbers<[1], [0], [0], [1], [0, 0, 1, 1], [], []>} : vector<16x8xbf16>, vector<8x32xbf16>, vector<16x32xf32> -> vector<16x32xf32>
    %96 = vector.broadcast %92 : vector<1x32xf32> to vector<16x32xf32>
    %97 = arith.addf %96, %95 : vector<16x32xf32>
    %c0_73 = arith.constant 0 : index
    %c0_74 = arith.constant 0 : index
    %c0_75 = arith.constant 0 : index
    %98 = vector.load %arg9[%c0_73, %c0_74, %c0_75] : memref<3x32x32xbf16, #tpu.memory_space<vmem>>, vector<1x32x32xbf16>
    %99 = vector.shape_cast %98 : vector<1x32x32xbf16> to vector<32x32xbf16>
    %cst_76 = arith.constant dense<0.000000e+00> : vector<16x32xf32>
    %100 = tpu.matmul %89, %99, %cst_76 {dimension_numbers = #tpu.dot_dimension_numbers<[1], [0], [0], [1], [0, 0, 1, 1], [], []>} : vector<16x32xbf16>, vector<32x32xbf16>, vector<16x32xf32> -> vector<16x32xf32>
    %101 = arith.addf %97, %100 : vector<16x32xf32>
    %c1_77 = arith.constant 1 : index
    %c0_78 = arith.constant 0 : index
    %c0_79 = arith.constant 0 : index
    %102 = vector.load %arg8[%c1_77, %c0_78, %c0_79] : memref<3x8x32xbf16, #tpu.memory_space<vmem>>, vector<1x8x32xbf16>
    %103 = vector.shape_cast %102 : vector<1x8x32xbf16> to vector<8x32xbf16>
    %cst_80 = arith.constant dense<0.000000e+00> : vector<16x32xf32>
    %104 = tpu.matmul %16, %103, %cst_80 {dimension_numbers = #tpu.dot_dimension_numbers<[1], [0], [0], [1], [0, 0, 1, 1], [], []>} : vector<16x8xbf16>, vector<8x32xbf16>, vector<16x32xf32> -> vector<16x32xf32>
    %105 = arith.addf %101, %104 : vector<16x32xf32>
    %c1_81 = arith.constant 1 : index
    %c0_82 = arith.constant 0 : index
    %c0_83 = arith.constant 0 : index
    %106 = vector.load %arg9[%c1_81, %c0_82, %c0_83] : memref<3x32x32xbf16, #tpu.memory_space<vmem>>, vector<1x32x32xbf16>
    %107 = vector.shape_cast %106 : vector<1x32x32xbf16> to vector<32x32xbf16>
    %cst_84 = arith.constant dense<0.000000e+00> : vector<16x32xf32>
    %108 = tpu.matmul %90, %107, %cst_84 {dimension_numbers = #tpu.dot_dimension_numbers<[1], [0], [0], [1], [0, 0, 1, 1], [], []>} : vector<16x32xbf16>, vector<32x32xbf16>, vector<16x32xf32> -> vector<16x32xf32>
    %109 = arith.addf %105, %108 : vector<16x32xf32>
    %c2_85 = arith.constant 2 : index
    %c0_86 = arith.constant 0 : index
    %c0_87 = arith.constant 0 : index
    %110 = vector.load %arg8[%c2_85, %c0_86, %c0_87] : memref<3x8x32xbf16, #tpu.memory_space<vmem>>, vector<1x8x32xbf16>
    %111 = vector.shape_cast %110 : vector<1x8x32xbf16> to vector<8x32xbf16>
    %cst_88 = arith.constant dense<0.000000e+00> : vector<16x32xf32>
    %112 = tpu.matmul %17, %111, %cst_88 {dimension_numbers = #tpu.dot_dimension_numbers<[1], [0], [0], [1], [0, 0, 1, 1], [], []>} : vector<16x8xbf16>, vector<8x32xbf16>, vector<16x32xf32> -> vector<16x32xf32>
    %113 = arith.addf %109, %112 : vector<16x32xf32>
    %c2_89 = arith.constant 2 : index
    %c0_90 = arith.constant 0 : index
    %c0_91 = arith.constant 0 : index
    %114 = vector.load %arg9[%c2_89, %c0_90, %c0_91] : memref<3x32x32xbf16, #tpu.memory_space<vmem>>, vector<1x32x32xbf16>
    %115 = vector.shape_cast %114 : vector<1x32x32xbf16> to vector<32x32xbf16>
    %cst_92 = arith.constant dense<0.000000e+00> : vector<16x32xf32>
    %116 = tpu.matmul %91, %115, %cst_92 {dimension_numbers = #tpu.dot_dimension_numbers<[1], [0], [0], [1], [0, 0, 1, 1], [], []>} : vector<16x32xbf16>, vector<32x32xbf16>, vector<16x32xf32> -> vector<16x32xf32>
    %117 = arith.addf %113, %116 : vector<16x32xf32>
    %118 = math.tanh %117 : vector<16x32xf32>
    %119 = arith.mulf %82, %4 : vector<16x32xf32>
    %cst_93 = arith.constant 1.000000e+00 : f32
    %120 = vector.broadcast %cst_93 : f32 to vector<16x32xf32>
    %121 = arith.subf %120, %82 : vector<16x32xf32>
    %122 = arith.mulf %121, %118 : vector<16x32xf32>
    %123 = arith.addf %119, %122 : vector<16x32xf32>
    %c0_94 = arith.constant 0 : index
    %c0_95 = arith.constant 0 : index
    %c0_96 = arith.constant 0 : index
    %124 = vector.load %arg13[%c0_94, %c0_95, %c0_96] : memref<1x16x32xf32, #tpu.memory_space<vmem>>, vector<1x16x32xf32>
    %125 = vector.shape_cast %124 : vector<1x16x32xf32> to vector<16x32xf32>
    %126 = vector.shape_cast %123 : vector<16x32xf32> to vector<1x16x32xf32>
    tpu.vector_store %arg13[%c0_94, %c0_95, %c0_96], %126 {strides = array<i32>} : memref<1x16x32xf32, #tpu.memory_space<vmem>>, vector<1x16x32xf32>,
    return
  }
  func.func @transform_0(%arg0: i32) -> (i32, i32) {
    %c0_i32 = arith.constant 0 : i32
    %c0_i32_0 = arith.constant 0 : i32
    %c0_i32_1 = arith.constant 0 : i32
    return %c0_i32, %c0_i32_0 : i32, i32
  }
  func.func @transform_1(%arg0: i32) -> (i32, i32, i32) {
    %c0_i32 = arith.constant 0 : i32
    %c0_i32_0 = arith.constant 0 : i32
    %c0_i32_1 = arith.constant 0 : i32
    return %arg0, %c0_i32, %c0_i32_0 : i32, i32, i32
  }
  func.func @transform_2(%arg0: i32) -> (i32, i32, i32) {
    %c0_i32 = arith.constant 0 : i32
    %c0_i32_0 = arith.constant 0 : i32
    %c0_i32_1 = arith.constant 0 : i32
    return %arg0, %c0_i32, %c0_i32_0 : i32, i32, i32
  }
  func.func @transform_3(%arg0: i32) -> (i32, i32, i32) {
    %c0_i32 = arith.constant 0 : i32
    %c0_i32_0 = arith.constant 0 : i32
    %c0_i32_1 = arith.constant 0 : i32
    %c0_i32_2 = arith.constant 0 : i32
    return %c0_i32, %c0_i32_0, %c0_i32_1 : i32, i32, i32
  }
  func.func @transform_4(%arg0: i32) -> (i32, i32, i32) {
    %c0_i32 = arith.constant 0 : i32
    %c0_i32_0 = arith.constant 0 : i32
    %c0_i32_1 = arith.constant 0 : i32
    %c0_i32_2 = arith.constant 0 : i32
    return %c0_i32, %c0_i32_0, %c0_i32_1 : i32, i32, i32
  }
  func.func @transform_5(%arg0: i32) -> (i32, i32, i32) {
    %c0_i32 = arith.constant 0 : i32
    %c0_i32_0 = arith.constant 0 : i32
    %c0_i32_1 = arith.constant 0 : i32
    %c0_i32_2 = arith.constant 0 : i32
    return %c0_i32, %c0_i32_0, %c0_i32_1 : i32, i32, i32
  }
  func.func @transform_6(%arg0: i32) -> (i32, i32, i32) {
    %c0_i32 = arith.constant 0 : i32
    %c0_i32_0 = arith.constant 0 : i32
    %c0_i32_1 = arith.constant 0 : i32
    %c0_i32_2 = arith.constant 0 : i32
    return %c0_i32, %c0_i32_0, %c0_i32_1 : i32, i32, i32
  }
  func.func @transform_7(%arg0: i32) -> (i32, i32, i32) {
    %c0_i32 = arith.constant 0 : i32
    %c0_i32_0 = arith.constant 0 : i32
    %c0_i32_1 = arith.constant 0 : i32
    %c0_i32_2 = arith.constant 0 : i32
    return %c0_i32, %c0_i32_0, %c0_i32_1 : i32, i32, i32
  }
  func.func @transform_8(%arg0: i32) -> (i32, i32, i32) {
    %c0_i32 = arith.constant 0 : i32
    %c0_i32_0 = arith.constant 0 : i32
    %c0_i32_1 = arith.constant 0 : i32
    %c0_i32_2 = arith.constant 0 : i32
    return %c0_i32, %c0_i32_0, %c0_i32_1 : i32, i32, i32
  }
  func.func @transform_9(%arg0: i32) -> (i32, i32) {
    %c0_i32 = arith.constant 0 : i32
    %c0_i32_0 = arith.constant 0 : i32
    %c0_i32_1 = arith.constant 0 : i32
    return %c0_i32, %c0_i32_0 : i32, i32
  }
  func.func @transform_10(%arg0: i32) -> (i32, i32) {
    %c0_i32 = arith.constant 0 : i32
    %c0_i32_0 = arith.constant 0 : i32
    %c0_i32_1 = arith.constant 0 : i32
    return %c0_i32, %c0_i32_0 : i32, i32
  }
  func.func @transform_11(%arg0: i32) -> (i32, i32) {
    %c0_i32 = arith.constant 0 : i32
    %c0_i32_0 = arith.constant 0 : i32
    %c0_i32_1 = arith.constant 0 : i32
    return %c0_i32, %c0_i32_0 : i32, i32
  }
  func.func @transform_12(%arg0: i32) -> (i32, i32, i32) {
    %c0_i32 = arith.constant 0 : i32
    %c0_i32_0 = arith.constant 0 : i32
    %c0_i32_1 = arith.constant 0 : i32
    return %arg0, %c0_i32, %c0_i32_0 : i32, i32, i32
  }
}

</mosaic_0001>

<llo_original>
// kernel: tpu_custom_call.1
$region0: #{tpu_custom_call.1}
  #allocation0 [shape = 'u32[]', space=smem, size = 0x4, offset = 0x4, fixed_abs, tag = 'smem constant byte address 0x4 - core index']
  #allocation1 [shape = 'u32[72,128]{1,0:T(1,128)}', space=vmem, size = 0x9000, scoped, tag = 'internal scratch']
  %s0 = inlined_call_operand.hbm [shape: f32[16,16], index: 0, kind: input, shape index: {}]
  %s1 = inlined_call_operand.vmem [shape: f32[2,16,8], index: 1, kind: input, shape index: {}]
  %s2 = inlined_call_operand.hbm [shape: f32[2,16,32], index: 2, kind: input, shape index: {}]
  %s3 = inlined_call_operand.hbm [shape: bf16[3,8,32], index: 3, kind: input, shape index: {}]
  %s4 = inlined_call_operand.vmem [shape: bf16[3,32,32], index: 4, kind: input, shape index: {}]
  %s5 = inlined_call_operand.hbm [shape: bf16[3,8,32], index: 5, kind: input, shape index: {}]
  %s6 = inlined_call_operand.hbm [shape: bf16[3,32,32], index: 6, kind: input, shape index: {}]
  %s7 = inlined_call_operand.hbm [shape: bf16[3,8,32], index: 7, kind: input, shape index: {}]
  %s8 = inlined_call_operand.hbm [shape: bf16[3,32,32], index: 8, kind: input, shape index: {}]
  %s9 = inlined_call_operand.vmem [shape: f32[1,32], index: 9, kind: input, shape index: {}]
  %s10 = inlined_call_operand.vmem [shape: f32[1,32], index: 10, kind: input, shape index: {}]
  %s11 = inlined_call_operand.vmem [shape: f32[1,32], index: 11, kind: input, shape index: {}]
  %s12 = inlined_call_operand.hbm [shape: f32[2,16,32], index: 12, kind: output, shape index: {}]
  %s13 = sld [smem:[#allocation0]]
  $region109: #{tpu_custom_call.1} parent=0
    _
  %s15 = ssub.s32 1, %s13
  %s16 = scalar_select 0, %s15, %s13
  $region1: #{tpu_custom_call.1} parent=0
    #allocation2 [shape = 'u8[8192]{0}', space=vmem, size = 0x2000, scoped, tag = 'input window, operand 0, single buffered']
    #allocation3 [shape = 's32[2]{0}', space=sflag, size = 0x8, scoped, tag = 'scoped memory for tpu_custom_call.1']
    #allocation4 [shape = 's32[2]{0}', space=sflag, size = 0x8, scoped, tag = 'scoped memory for tpu_custom_call.1']
    #allocation5 [shape = 'u8[16384]{0}', space=vmem, size = 0x4000, scoped, tag = 'input window, operand 2']
    #allocation6 [shape = 's32[2]{0}', space=sflag, size = 0x8, scoped, tag = 'scoped memory for tpu_custom_call.1']
    #allocation7 [shape = 'u8[6144]{0}', space=vmem, size = 0x1800, scoped, tag = 'input window, operand 3, single buffered']
    #allocation8 [shape = 'u8[6144]{0}', space=vmem, size = 0x1800, scoped, tag = 'input window, operand 5, single buffered']
    #allocation9 [shape = 's32[1]{0}', space=sflag, size = 0x4, scoped, tag = 'scoped memory for tpu_custom_call.1']
    #allocation10 [shape = 'u8[24576]{0}', space=vmem, size = 0x6000, scoped, tag = 'input window, operand 6, single buffered']
    #allocation11 [shape = 'u8[6144]{0}', space=vmem, size = 0x1800, scoped, tag = 'input window, operand 7, single buffered']
    #allocation12 [shape = 's32[1]{0}', space=sflag, size = 0x4, scoped, tag = 'scoped memory for tpu_custom_call.1']
    #allocation13 [shape = 'u8[24576]{0}', space=vmem, size = 0x6000, scoped, tag = 'input window, operand 8, single buffered']
    #allocation14 [shape = 'u8[16384]{0}', space=vmem, size = 0x4000, scoped, tag = 'output window, operand 0']
    %17 = vsyncpa [#allocation3], 0
    %18 = vsyncpa [#allocation6], 0
    %s19 = scalar_lea.sflag [#allocation6], 1
    %20 = vsyncpa %s19, 0
    %21 = vsyncpa [#allocation9], 0
    %22 = vsyncpa [#allocation12], 0
    %23 = vsyncpa [#allocation4], 0
    %s24 = scalar_lea.sflag [#allocation4], 1
    %25 = vsyncpa %s24, 0
    loop: start=0, step=1, limit=4
    $region2: #{tpu_custom_call.1} parent=1 // loop_pre_header
      _
    $region3: #{tpu_custom_call.1} parent=1 // loop_header
      %s27 = sphi 0, %s31
      %p28 = scmp.ge.s32.totalorder %s27, 4
      %s35 = sphi 0, %s35
      %s37 = sphi 0, %s35
      %s38 = sphi 0, %s37
      %s52 = sphi 0, %s38
      %s58 = sphi 0, %s60
      %s61 = sphi 0, %s58
      %s62 = sphi 0, %s61
      %s78 = sphi 0, %s62
      %s84 = sphi 0, %s86
      %s87 = sphi 0, %s84
      %s88 = sphi 0, %s87
      %s104 = sphi 0, %s88
      %s108 = sphi 0, %s108
      %s110 = sphi 0, %s108
      %s111 = sphi 0, %s110
      %s125 = sphi 0, %s111
      %s129 = sphi 0, %s129
      %s131 = sphi 0, %s129
      %s132 = sphi 0, %s131
      %s146 = sphi 0, %s132
      %s150 = sphi 0, %s150
      %s152 = sphi 0, %s150
      %s153 = sphi 0, %s152
      %s167 = sphi 0, %s153
      %s171 = sphi 0, %s171
      %s173 = sphi 0, %s171
      %s174 = sphi 0, %s173
      %s188 = sphi 0, %s174
      %s192 = sphi 0, %s192
      %s194 = sphi 0, %s192
      %s195 = sphi 0, %s194
      %s209 = sphi 0, %s195
      %s213 = sphi 0, %s213
      %s215 = sphi 0, %s213
      %s216 = sphi 0, %s215
      %s230 = sphi 0, %s216
      %s234 = sphi 0, %s234
      %s236 = sphi 0, %s234
      %s237 = sphi 0, %s236
      %s251 = sphi 0, %s237
      %s255 = sphi 0, %s255
      %s257 = sphi 0, %s255
      %s258 = sphi 0, %s257
      %s272 = sphi 0, %s258
      %s276 = sphi 0, %s276
      %s278 = sphi 0, %s276
      %s279 = sphi 0, %s278
      %s293 = sphi 0, %s279
      %s299 = sphi 0, %s301
      %s302 = sphi 0, %s299
      %s303 = sphi 0, %s302
      %s319 = sphi 0, %s303
    $region4: #{tpu_custom_call.1} parent=1 // loop_header_branch
      %30 = sbr.rel (%p28) target = $region8
    $region5: #{tpu_custom_call.1} parent=1 // loop_body
      %s32 = ssub.s32 %s27, 1
      %s33 = ssub.s32 %s27, 2
      %s34 = sadd.s32 %s27, 1
      %s36 = sadd.s32 %s35, 1
      %p39 = scmp.eq.s32.totalorder %s27, 1
      %p40 = scmp.ne.s32.totalorder %s35, %s37
      %p41 = scmp.eq.s32.totalorder %s27, 0
      %p42 = por %p40, %p41
      %p43 = scmp.ne.s32.totalorder %s35, %s37
      %p44 = scmp.eq.s32.totalorder %s32, 1
      %p45 = por %p43, %p44
      %p46 = scmp.ne.s32.totalorder %s37, %s38
      %p47 = scmp.eq.s32.totalorder %s32, 0
      %p48 = por %p46, %p47
      %p49 = scmp.ne.s32.totalorder %s37, %s38
      %p50 = scmp.eq.s32.totalorder %s33, 1
      %p51 = por %p49, %p50
      %p53 = scmp.ne.s32.totalorder %s38, %s52
      %p54 = scmp.eq.s32.totalorder %s33, 0
      %p55 = por %p53, %p54
      %s56 = ssub.s32 %s27, %s34
      %p57 = scmp.eq.s32.totalorder %s56, 0
      %s59 = sadd.s32 %s58, 1
      %s60 = scalar_select %p57, %s58, %s59
      %p63 = pneg %p57
      %p64 = scmp.eq.s32.totalorder %s27, 1
      %p65 = por %p63, %p64
      %p66 = scmp.ne.s32.totalorder %s58, %s61
      %p67 = scmp.eq.s32.totalorder %s27, 0
      %p68 = por %p66, %p67
      %p69 = scmp.ne.s32.totalorder %s58, %s61
      %p70 = scmp.eq.s32.totalorder %s32, 1
      %p71 = por %p69, %p70
      %p72 = scmp.ne.s32.totalorder %s61, %s62
      %p73 = scmp.eq.s32.totalorder %s32, 0
      %p74 = por %p72, %p73
      %p75 = scmp.ne.s32.totalorder %s61, %s62
      %p76 = scmp.eq.s32.totalorder %s33, 1
      %p77 = por %p75, %p76
      %p79 = scmp.ne.s32.totalorder %s62, %s78
      %p80 = scmp.eq.s32.totalorder %s33, 0
      %p81 = por %p79, %p80
      %s82 = ssub.s32 %s27, %s34
      %p83 = scmp.eq.s32.totalorder %s82, 0
      %s85 = sadd.s32 %s84, 1
      %s86 = scalar_select %p83, %s84, %s85
      %p89 = pneg %p83
      %p90 = scmp.eq.s32.totalorder %s27, 1
      %p91 = por %p89, %p90
      %p92 = scmp.ne.s32.totalorder %s84, %s87
      %p93 = scmp.eq.s32.totalorder %s27, 0
      %p94 = por %p92, %p93
      %p95 = scmp.ne.s32.totalorder %s84, %s87
      %p96 = scmp.eq.s32.totalorder %s32, 1
      %p97 = por %p95, %p96
      %p98 = scmp.ne.s32.totalorder %s87, %s88
      %p99 = scmp.eq.s32.totalorder %s32, 0
      %p100 = por %p98, %p99
      %p101 = scmp.ne.s32.totalorder %s87, %s88
      %p102 = scmp.eq.s32.totalorder %s33, 1
      %p103 = por %p101, %p102
      %p105 = scmp.ne.s32.totalorder %s88, %s104
      %p106 = scmp.eq.s32.totalorder %s33, 0
      %p107 = por %p105, %p106
      %s109 = sadd.s32 %s108, 1
      %p112 = scmp.eq.s32.totalorder %s27, 1
      %p113 = scmp.ne.s32.totalorder %s108, %s110
      %p114 = scmp.eq.s32.totalorder %s27, 0
      %p115 = por %p113, %p114
      %p116 = scmp.ne.s32.totalorder %s108, %s110
      %p117 = scmp.eq.s32.totalorder %s32, 1
      %p118 = por %p116, %p117
      %p119 = scmp.ne.s32.totalorder %s110, %s111
      %p120 = scmp.eq.s32.totalorder %s32, 0
      %p121 = por %p119, %p120
      %p122 = scmp.ne.s32.totalorder %s110, %s111
      %p123 = scmp.eq.s32.totalorder %s33, 1
      %p124 = por %p122, %p123
      %p126 = scmp.ne.s32.totalorder %s111, %s125
      %p127 = scmp.eq.s32.totalorder %s33, 0
      %p128 = por %p126, %p127
      %s130 = sadd.s32 %s129, 1
      %p133 = scmp.eq.s32.totalorder %s27, 1
      %p134 = scmp.ne.s32.totalorder %s129, %s131
      %p135 = scmp.eq.s32.totalorder %s27, 0
      %p136 = por %p134, %p135
      %p137 = scmp.ne.s32.totalorder %s129, %s131
      %p138 = scmp.eq.s32.totalorder %s32, 1
      %p139 = por %p137, %p138
      %p140 = scmp.ne.s32.totalorder %s131, %s132
      %p141 = scmp.eq.s32.totalorder %s32, 0
      %p142 = por %p140, %p141
      %p143 = scmp.ne.s32.totalorder %s131, %s132
      %p144 = scmp.eq.s32.totalorder %s33, 1
      %p145 = por %p143, %p144
      %p147 = scmp.ne.s32.totalorder %s132, %s146
      %p148 = scmp.eq.s32.totalorder %s33, 0
      %p149 = por %p147, %p148
      %s151 = sadd.s32 %s150, 1
      %p154 = scmp.eq.s32.totalorder %s27, 1
      %p155 = scmp.ne.s32.totalorder %s150, %s152
      %p156 = scmp.eq.s32.totalorder %s27, 0
      %p157 = por %p155, %p156
      %p158 = scmp.ne.s32.totalorder %s150, %s152
      %p159 = scmp.eq.s32.totalorder %s32, 1
      %p160 = por %p158, %p159
      %p161 = scmp.ne.s32.totalorder %s152, %s153
      %p162 = scmp.eq.s32.totalorder %s32, 0
      %p163 = por %p161, %p162
      %p164 = scmp.ne.s32.totalorder %s152, %s153
      %p165 = scmp.eq.s32.totalorder %s33, 1
      %p166 = por %p164, %p165
      %p168 = scmp.ne.s32.totalorder %s153, %s167
      %p169 = scmp.eq.s32.totalorder %s33, 0
      %p170 = por %p168, %p169
      %s172 = sadd.s32 %s171, 1
      %p175 = scmp.eq.s32.totalorder %s27, 1
      %p176 = scmp.ne.s32.totalorder %s171, %s173
      %p177 = scmp.eq.s32.totalorder %s27, 0
      %p178 = por %p176, %p177
      %p179 = scmp.ne.s32.totalorder %s171, %s173
      %p180 = scmp.eq.s32.totalorder %s32, 1
      %p181 = por %p179, %p180
      %p182 = scmp.ne.s32.totalorder %s173, %s174
      %p183 = scmp.eq.s32.totalorder %s32, 0
      %p184 = por %p182, %p183
      %p185 = scmp.ne.s32.totalorder %s173, %s174
      %p186 = scmp.eq.s32.totalorder %s33, 1
      %p187 = por %p185, %p186
      %p189 = scmp.ne.s32.totalorder %s174, %s188
      %p190 = scmp.eq.s32.totalorder %s33, 0
      %p191 = por %p189, %p190
      %s193 = sadd.s32 %s192, 1
      %p196 = scmp.eq.s32.totalorder %s27, 1
      %p197 = scmp.ne.s32.totalorder %s192, %s194
      %p198 = scmp.eq.s32.totalorder %s27, 0
      %p199 = por %p197, %p198
      %p200 = scmp.ne.s32.totalorder %s192, %s194
      %p201 = scmp.eq.s32.totalorder %s32, 1
      %p202 = por %p200, %p201
      %p203 = scmp.ne.s32.totalorder %s194, %s195
      %p204 = scmp.eq.s32.totalorder %s32, 0
      %p205 = por %p203, %p204
      %p206 = scmp.ne.s32.totalorder %s194, %s195
      %p207 = scmp.eq.s32.totalorder %s33, 1
      %p208 = por %p206, %p207
      %p210 = scmp.ne.s32.totalorder %s195, %s209
      %p211 = scmp.eq.s32.totalorder %s33, 0
      %p212 = por %p210, %p211
      %s214 = sadd.s32 %s213, 1
      %p217 = scmp.eq.s32.totalorder %s27, 1
      %p218 = scmp.ne.s32.totalorder %s213, %s215
      %p219 = scmp.eq.s32.totalorder %s27, 0
      %p220 = por %p218, %p219
      %p221 = scmp.ne.s32.totalorder %s213, %s215
      %p222 = scmp.eq.s32.totalorder %s32, 1
      %p223 = por %p221, %p222
      %p224 = scmp.ne.s32.totalorder %s215, %s216
      %p225 = scmp.eq.s32.totalorder %s32, 0
      %p226 = por %p224, %p225
      %p227 = scmp.ne.s32.totalorder %s215, %s216
      %p228 = scmp.eq.s32.totalorder %s33, 1
      %p229 = por %p227, %p228
      %p231 = scmp.ne.s32.totalorder %s216, %s230
      %p232 = scmp.eq.s32.totalorder %s33, 0
      %p233 = por %p231, %p232
      %s235 = sadd.s32 %s234, 1
      %p238 = scmp.eq.s32.totalorder %s27, 1
      %p239 = scmp.ne.s32.totalorder %s234, %s236
      %p240 = scmp.eq.s32.totalorder %s27, 0
      %p241 = por %p239, %p240
      %p242 = scmp.ne.s32.totalorder %s234, %s236
      %p243 = scmp.eq.s32.totalorder %s32, 1
      %p244 = por %p242, %p243
      %p245 = scmp.ne.s32.totalorder %s236, %s237
      %p246 = scmp.eq.s32.totalorder %s32, 0
      %p247 = por %p245, %p246
      %p248 = scmp.ne.s32.totalorder %s236, %s237
      %p249 = scmp.eq.s32.totalorder %s33, 1
      %p250 = por %p248, %p249
      %p252 = scmp.ne.s32.totalorder %s237, %s251
      %p253 = scmp.eq.s32.totalorder %s33, 0
      %p254 = por %p252, %p253
      %s256 = sadd.s32 %s255, 1
      %p259 = scmp.eq.s32.totalorder %s27, 1
      %p260 = scmp.ne.s32.totalorder %s255, %s257
      %p261 = scmp.eq.s32.totalorder %s27, 0
      %p262 = por %p260, %p261
      %p263 = scmp.ne.s32.totalorder %s255, %s257
      %p264 = scmp.eq.s32.totalorder %s32, 1
      %p265 = por %p263, %p264
      %p266 = scmp.ne.s32.totalorder %s257, %s258
      %p267 = scmp.eq.s32.totalorder %s32, 0
      %p268 = por %p266, %p267
      %p269 = scmp.ne.s32.totalorder %s257, %s258
      %p270 = scmp.eq.s32.totalorder %s33, 1
      %p271 = por %p269, %p270
      %p273 = scmp.ne.s32.totalorder %s258, %s272
      %p274 = scmp.eq.s32.totalorder %s33, 0
      %p275 = por %p273, %p274
      %s277 = sadd.s32 %s276, 1
      %p280 = scmp.eq.s32.totalorder %s27, 1
      %p281 = scmp.ne.s32.totalorder %s276, %s278
      %p282 = scmp.eq.s32.totalorder %s27, 0
      %p283 = por %p281, %p282
      %p284 = scmp.ne.s32.totalorder %s276, %s278
      %p285 = scmp.eq.s32.totalorder %s32, 1
      %p286 = por %p284, %p285
      %p287 = scmp.ne.s32.totalorder %s278, %s279
      %p288 = scmp.eq.s32.totalorder %s32, 0
      %p289 = por %p287, %p288
      %p290 = scmp.ne.s32.totalorder %s278, %s279
      %p291 = scmp.eq.s32.totalorder %s33, 1
      %p292 = por %p290, %p291
      %p294 = scmp.ne.s32.totalorder %s279, %s293
      %p295 = scmp.eq.s32.totalorder %s33, 0
      %p296 = por %p294, %p295
      %s297 = ssub.s32 %s27, %s34
      %p298 = scmp.eq.s32.totalorder %s297, 0
      %s300 = sadd.s32 %s299, 1
      %s301 = scalar_select %p298, %s299, %s300
      %p304 = pneg %p298
      %p305 = scmp.eq.s32.totalorder %s27, 1
      %p306 = por %p304, %p305
      %p307 = scmp.ne.s32.totalorder %s299, %s302
      %p308 = scmp.eq.s32.totalorder %s27, 0
      %p309 = por %p307, %p308
      %p310 = scmp.ne.s32.totalorder %s299, %s302
      %p311 = scmp.eq.s32.totalorder %s32, 1
      %p312 = por %p310, %p311
      %p313 = scmp.ne.s32.totalorder %s302, %s303
      %p314 = scmp.eq.s32.totalorder %s32, 0
      %p315 = por %p313, %p314
      %p316 = scmp.ne.s32.totalorder %s302, %s303
      %p317 = scmp.eq.s32.totalorder %s33, 1
      %p318 = por %p316, %p317
      %p320 = scmp.ne.s32.totalorder %s303, %s319
      %p321 = scmp.eq.s32.totalorder %s33, 0
      %p322 = por %p320, %p321
      %p323 = scmp.le.s32.totalorder 1, %s27
      %p324 = scmp.lt.s32.totalorder %s27, 3
      %p325 = pnand %p323, %p324
      %p326 = pneg %p325
      // Predicated region
      $region9: #{tpu_custom_call.1} parent=5 // pred_check
        _
      $region10: #{tpu_custom_call.1} parent=5 // pred_check_branch
        %328 = sbr.rel (%p325) target = $region12
      $region11: #{tpu_custom_call.1} parent=5 // pred_region
        %s329 = ssub.s32 %s27, 1
        // Predicated region
        $region13: #{tpu_custom_call.1} parent=11 // pred_check
          %p330 = pneg %p48
        $region14: #{tpu_custom_call.1} parent=11 // pred_check_branch
          %332 = sbr.rel (%p330) target = $region16
        $region15: #{tpu_custom_call.1} parent=11 // pred_region
          %334 = vsyncadd [#allocation3], 0
          %s335 = sshll.u32 %s0, 4
          %s336 = int_to_ptr.hbm [resolvable:$true] %s335
          %s337 = sshll.u32 [#allocation2], 4
          %s338 = int_to_ptr.vmem [resolvable:$true] %s337
          %343 = dma.hbm_to_vmem [thread:$0]  %s336, 256, %s338, [#allocation3], 128, 128, 8
        $region16: #{tpu_custom_call.1} parent=11 // pred_fallthru
          _
        // Predicated region
        $region17: #{tpu_custom_call.1} parent=11 // pred_check
          %p344 = pneg %p121
        $region18: #{tpu_custom_call.1} parent=11 // pred_check_branch
          %346 = sbr.rel (%p344) target = $region20
        $region19: #{tpu_custom_call.1} parent=11 // pred_region
          %348 = vsyncadd [#allocation6], 0
          %s349 = sshll.u32 %s3, 4
          %s350 = int_to_ptr.hbm [resolvable:$true] %s349
          %s351 = sshll.u32 [#allocation7], 4
          %s352 = int_to_ptr.vmem [resolvable:$true] %s351
          %357 = dma.hbm_to_vmem [thread:$0]  %s350, 192, %s352, [#allocation6], 64, 64, 4
        $region20: #{tpu_custom_call.1} parent=11 // pred_fallthru
          _
        // Predicated region
        $region21: #{tpu_custom_call.1} parent=11 // pred_check
          %p358 = pneg %p142
        $region22: #{tpu_custom_call.1} parent=11 // pred_check_branch
          %360 = sbr.rel (%p358) target = $region24
        $region23: #{tpu_custom_call.1} parent=11 // pred_region
          _
        $region24: #{tpu_custom_call.1} parent=11 // pred_fallthru
          _
        // Predicated region
        $region25: #{tpu_custom_call.1} parent=11 // pred_check
          %p361 = pneg %p163
        $region26: #{tpu_custom_call.1} parent=11 // pred_check_branch
          %363 = sbr.rel (%p361) target = $region28
        $region27: #{tpu_custom_call.1} parent=11 // pred_region
          %365 = vsyncadd [#allocation9], 0
          %s366 = sshll.u32 %s5, 4
          %s367 = int_to_ptr.hbm [resolvable:$true] %s366
          %s368 = sshll.u32 [#allocation8], 4
          %s369 = int_to_ptr.vmem [resolvable:$true] %s368
          %374 = dma.hbm_to_vmem [thread:$0]  %s367, 192, %s369, [#allocation9], 64, 64, 4
        $region28: #{tpu_custom_call.1} parent=11 // pred_fallthru
          _
        // Predicated region
        $region29: #{tpu_custom_call.1} parent=11 // pred_check
          %p375 = pneg %p184
        $region30: #{tpu_custom_call.1} parent=11 // pred_check_branch
          %377 = sbr.rel (%p375) target = $region32
        $region31: #{tpu_custom_call.1} parent=11 // pred_region
          %379 = vsyncadd [#allocation9], 0
          %s380 = sshll.u32 %s6, 4
          %s381 = int_to_ptr.hbm [resolvable:$true] %s380
          %s382 = sshll.u32 [#allocation10], 4
          %s383 = int_to_ptr.vmem [resolvable:$true] %s382
          %388 = dma.hbm_to_vmem [thread:$0]  %s381, 768, %s383, [#allocation9], 64, 64, 4
        $region32: #{tpu_custom_call.1} parent=11 // pred_fallthru
          _
        // Predicated region
        $region33: #{tpu_custom_call.1} parent=11 // pred_check
          %p389 = pneg %p205
        $region34: #{tpu_custom_call.1} parent=11 // pred_check_branch
          %391 = sbr.rel (%p389) target = $region36
        $region35: #{tpu_custom_call.1} parent=11 // pred_region
          %393 = vsyncadd [#allocation12], 0
          %s394 = sshll.u32 %s7, 4
          %s395 = int_to_ptr.hbm [resolvable:$true] %s394
          %s396 = sshll.u32 [#allocation11], 4
          %s397 = int_to_ptr.vmem [resolvable:$true] %s396
          %402 = dma.hbm_to_vmem [thread:$0]  %s395, 192, %s397, [#allocation12], 64, 64, 4
        $region36: #{tpu_custom_call.1} parent=11 // pred_fallthru
          _
        // Predicated region
        $region37: #{tpu_custom_call.1} parent=11 // pred_check
          %p403 = pneg %p226
        $region38: #{tpu_custom_call.1} parent=11 // pred_check_branch
          %405 = sbr.rel (%p403) target = $region40
        $region39: #{tpu_custom_call.1} parent=11 // pred_region
          %407 = vsyncadd [#allocation12], 0
          %s408 = sshll.u32 %s8, 4
          %s409 = int_to_ptr.hbm [resolvable:$true] %s408
          %s410 = sshll.u32 [#allocation13], 4
          %s411 = int_to_ptr.vmem [resolvable:$true] %s410
          %416 = dma.hbm_to_vmem [thread:$0]  %s409, 768, %s411, [#allocation12], 64, 64, 4
        $region40: #{tpu_custom_call.1} parent=11 // pred_fallthru
          _
        // Predicated region
        $region41: #{tpu_custom_call.1} parent=11 // pred_check
          %p417 = pneg %p247
        $region42: #{tpu_custom_call.1} parent=11 // pred_check_branch
          %419 = sbr.rel (%p417) target = $region44
        $region43: #{tpu_custom_call.1} parent=11 // pred_region
          _
        $region44: #{tpu_custom_call.1} parent=11 // pred_fallthru
          _
        // Predicated region
        $region45: #{tpu_custom_call.1} parent=11 // pred_check
          %p420 = pneg %p268
        $region46: #{tpu_custom_call.1} parent=11 // pred_check_branch
          %422 = sbr.rel (%p420) target = $region48
        $region47: #{tpu_custom_call.1} parent=11 // pred_region
          _
        $region48: #{tpu_custom_call.1} parent=11 // pred_fallthru
          _
        // Predicated region
        $region49: #{tpu_custom_call.1} parent=11 // pred_check
          %p423 = pneg %p289
        $region50: #{tpu_custom_call.1} parent=11 // pred_check_branch
          %425 = sbr.rel (%p423) target = $region52
        $region51: #{tpu_custom_call.1} parent=11 // pred_region
          _
        $region52: #{tpu_custom_call.1} parent=11 // pred_fallthru
          _
      $region12: #{tpu_custom_call.1} parent=5 // pred_fallthru
        _
      %p426 = scmp.lt.s32.totalorder %s27, 2
      // Predicated region
      $region53: #{tpu_custom_call.1} parent=5 // pred_check
        %p427 = pneg %p426
      $region54: #{tpu_custom_call.1} parent=5 // pred_check_branch
        %429 = sbr.rel (%p427) target = $region56
      $region55: #{tpu_custom_call.1} parent=5 // pred_region
        // Predicated region
        $region57: #{tpu_custom_call.1} parent=55 // pred_check
          %p430 = pneg %p68
        $region58: #{tpu_custom_call.1} parent=55 // pred_check_branch
          %432 = sbr.rel (%p430) target = $region60
        $region59: #{tpu_custom_call.1} parent=55 // pred_region
          %p433 = scmp.lt.s32.totalorder %s27, 1
          %s434 = scalar_select %p433, %s27, 1
          %s435 = smul.addr %s434, 2
          %s436 = smul.addr %s435, 8
          %s437 = scalar_lea.vmem %s1, %s436
        $region60: #{tpu_custom_call.1} parent=55 // pred_fallthru
          _
        // Predicated region
        $region61: #{tpu_custom_call.1} parent=55 // pred_check
          %p438 = pneg %p94
        $region62: #{tpu_custom_call.1} parent=55 // pred_check_branch
          %440 = sbr.rel (%p438) target = $region64
        $region63: #{tpu_custom_call.1} parent=55 // pred_region
          %s441 = sand.u32 %s27, 1
          %s442 = scalar_lea.sflag [#allocation6], %s441
          %s443 = sand.u32 %s84, 1
          %s444 = smul.addr %s443, 16
          %s445 = scalar_lea.vmem [#allocation5], %s444
          %447 = vsyncadd %s442, 0
          %s448 = smul.addr %s27, 2
          %s449 = smul.addr %s448, 8
          %s450 = scalar_lea.hbm %s2, %s449
          %s451 = sshll.u32 %s450, 4
          %s452 = int_to_ptr.hbm [resolvable:$true] %s451
          %s453 = sshll.u32 %s445, 4
          %s454 = int_to_ptr.vmem [resolvable:$true] %s453
          %459 = dma.hbm_to_vmem [thread:$0]  %s452, 256, %s454, %s442, 128, 128, 8
        $region64: #{tpu_custom_call.1} parent=55 // pred_fallthru
          _
      $region56: #{tpu_custom_call.1} parent=5 // pred_fallthru
        _
      %p460 = scmp.le.s32.totalorder 1, %s27
      %p461 = scmp.lt.s32.totalorder %s27, 3
      %p462 = pnand %p460, %p461
      %p463 = pneg %p462
      // Predicated region
      $region65: #{tpu_custom_call.1} parent=5 // pred_check
        _
      $region66: #{tpu_custom_call.1} parent=5 // pred_check_branch
        %465 = sbr.rel (%p462) target = $region68
      $region67: #{tpu_custom_call.1} parent=5 // pred_region
        %s466 = ssub.s32 %s27, 1
        // Predicated region
        $region69: #{tpu_custom_call.1} parent=67 // pred_check
          %p467 = pneg %p48
        $region70: #{tpu_custom_call.1} parent=67 // pred_check_branch
          %469 = sbr.rel (%p467) target = $region72
        $region71: #{tpu_custom_call.1} parent=67 // pred_region
          %471 = dma.done [#allocation3], 256
        $region72: #{tpu_custom_call.1} parent=67 // pred_fallthru
          _
        %s472 = sand.u32 %s32, 1
        %s473 = scalar_lea.sflag [#allocation6], %s472
        %s474 = sand.u32 %s87, 1
        %s475 = smul.addr %s474, 16
        %s476 = scalar_lea.vmem [#allocation5], %s475
        // Predicated region
        $region73: #{tpu_custom_call.1} parent=67 // pred_check
          %p477 = pneg %p100
        $region74: #{tpu_custom_call.1} parent=67 // pred_check_branch
          %479 = sbr.rel (%p477) target = $region76
        $region75: #{tpu_custom_call.1} parent=67 // pred_region
          %481 = dma.done %s473, 256
        $region76: #{tpu_custom_call.1} parent=67 // pred_fallthru
          _
        // Predicated region
        $region77: #{tpu_custom_call.1} parent=67 // pred_check
          %p482 = pneg %p121
        $region78: #{tpu_custom_call.1} parent=67 // pred_check_branch
          %484 = sbr.rel (%p482) target = $region80
        $region79: #{tpu_custom_call.1} parent=67 // pred_region
          %486 = dma.done [#allocation6], 192
        $region80: #{tpu_custom_call.1} parent=67 // pred_fallthru
          _
        // Predicated region
        $region81: #{tpu_custom_call.1} parent=67 // pred_check
          %p487 = pneg %p163
        $region82: #{tpu_custom_call.1} parent=67 // pred_check_branch
          %489 = sbr.rel (%p487) target = $region84
        $region83: #{tpu_custom_call.1} parent=67 // pred_region
          %491 = dma.done [#allocation9], 192
        $region84: #{tpu_custom_call.1} parent=67 // pred_fallthru
          _
        // Predicated region
        $region85: #{tpu_custom_call.1} parent=67 // pred_check
          %p492 = pneg %p184
        $region86: #{tpu_custom_call.1} parent=67 // pred_check_branch
          %494 = sbr.rel (%p492) target = $region88
        $region87: #{tpu_custom_call.1} parent=67 // pred_region
          %496 = dma.done [#allocation9], 768
        $region88: #{tpu_custom_call.1} parent=67 // pred_fallthru
          _
        // Predicated region
        $region89: #{tpu_custom_call.1} parent=67 // pred_check
          %p497 = pneg %p205
        $region90: #{tpu_custom_call.1} parent=67 // pred_check_branch
          %499 = sbr.rel (%p497) target = $region92
        $region91: #{tpu_custom_call.1} parent=67 // pred_region
          %501 = dma.done [#allocation12], 192
        $region92: #{tpu_custom_call.1} parent=67 // pred_fallthru
          _
        // Predicated region
        $region93: #{tpu_custom_call.1} parent=67 // pred_check
          %p502 = pneg %p226
        $region94: #{tpu_custom_call.1} parent=67 // pred_check_branch
          %504 = sbr.rel (%p502) target = $region96
        $region95: #{tpu_custom_call.1} parent=67 // pred_region
          %506 = dma.done [#allocation12], 768
        $region96: #{tpu_custom_call.1} parent=67 // pred_fallthru
          _
        %p507 = pneg %p48
        %p508 = pneg %p45
        %p509 = scmp.lt.s32.totalorder %s32, 1
        %s510 = scalar_select %p509, %s32, 1
        %s511 = smul.addr %s510, 2
        %s512 = smul.addr %s511, 8
        %s513 = scalar_lea.vmem %s1, %s512
        %p514 = pneg %p74
        %p515 = pneg %p71
        %s516 = sand.u32 %s32, 1
        %s517 = scalar_lea.sflag [#allocation6], %s516
        %s518 = sand.u32 %s87, 1
        %s519 = smul.addr %s518, 16
        %s520 = scalar_lea.vmem [#allocation5], %s519
        %p521 = pneg %p100
        %p522 = pneg %p97
        %p523 = pneg %p121
        %p524 = pneg %p118
        %p525 = pneg %p142
        %p526 = pneg %p139
        %p527 = pneg %p163
        %p528 = pneg %p160
        %p529 = pneg %p184
        %p530 = pneg %p181
        %p531 = pneg %p205
        %p532 = pneg %p202
        %p533 = pneg %p226
        %p534 = pneg %p223
        %p535 = pneg %p247
        %p536 = pneg %p244
        %p537 = pneg %p268
        %p538 = pneg %p265
        %p539 = pneg %p289
        %p540 = pneg %p286
        %p541 = pneg %p315
        %p542 = pneg %p312
        %s543 = sand.u32 %s302, 1
        %s544 = scalar_lea.sflag [#allocation4], %s543
        %s545 = sand.u32 %s302, 1
        %s546 = smul.addr %s545, 16
        %s547 = scalar_lea.vmem [#allocation14], %s546
        %p548 = scmp.lt.s32.totalorder %s32, 1
        %s549 = scalar_select %p548, %s32, 1
        %s550 = smul.addr %s549, 2
        %s551 = smul.addr %s550, 8
        %s552 = scalar_lea.vmem %s1, %s551
        %v554 = vld [vmem:[#allocation2] sm:$0xff]
        %v555 = vld [vmem:[#allocation2 + $0x8] sm:$0xff]
        %v556 = vld [vmem:[%s552] sm:$0xff]
        %v557 = vld [vmem:[%s552 + $0x8] sm:$0xff]
        %v558 = vld [vmem:[%s476] sm:$0xff]
        %v559 = vld [vmem:[%s476 + $0x8] sm:$0xff]
        %vm560 = vcmask 130048
        %v562 = vsel %vm560, %v554, 0
        %v565 = vsel %vm560, %v555, 0
        %567 = vmatpush.msra.mxu0 0.0
        %568 = vmatpush.msra.mxu0 0.0
        %569 = vmatpush.msra.mxu0 0.0
        %570 = vmatpush.msra.mxu0 0.0
        %571 = vmatpush.msra.mxu0 0.0
        %572 = vmatpush.msra.mxu0 0.0
        %573 = vmatpush.msra.mxu0 0.0
        %574 = vmatpush.msra.mxu0 0.0
        %575 = vmatpush.msra.mxu0 0.0
        %576 = vmatpush.msra.mxu0 0.0
        %577 = vmatpush.msra.mxu0 0.0
        %578 = vmatpush.msra.mxu0 0.0
        %579 = vmatpush.msra.mxu0 0.0
        %580 = vmatpush.msra.mxu0 0.0
        %581 = vmatpush.msra.mxu0 %v557
        %582 = vmatpush.msra.mxu0 %v556
        %583 = vmatmul.f32.gmra.mxu0 %v562
        %v584 = vpop.f32.mrf.mxu0
        %v585 = vadd.f32 0.0, %v584
        %586 = vmatmul.f32.gmra.mxu0 %v565
        %v587 = vpop.f32.mrf.mxu0
        %v588 = vadd.f32 0.0, %v587
        %589 = vdwg.mxu0
        %590 = vmatpush.msra.mxu0 0.0
        %591 = vmatpush.msra.mxu0 0.0
        %592 = vmatpush.msra.mxu0 0.0
        %593 = vmatpush.msra.mxu0 0.0
        %594 = vmatpush.msra.mxu0 0.0
        %595 = vmatpush.msra.mxu0 0.0
        %596 = vmatpush.msra.mxu0 0.0
        %597 = vmatpush.msra.mxu0 0.0
        %598 = vmatpush.msra.mxu0 0.0
        %599 = vmatpush.msra.mxu0 0.0
        %600 = vmatpush.msra.mxu0 0.0
        %601 = vmatpush.msra.mxu0 0.0
        %602 = vmatpush.msra.mxu0 0.0
        %603 = vmatpush.msra.mxu0 0.0
        %604 = vmatpush.msra.mxu0 %v588
        %605 = vmatpush.msra.mxu0 %v585
        %606 = vmatmul.f32.gmra.mxu0 %v562
        %v607 = vpop.f32.mrf.mxu0
        %v608 = vadd.f32 0.0, %v607
        %609 = vmatmul.f32.gmra.mxu0 %v565
        %v610 = vpop.f32.mrf.mxu0
        %v611 = vadd.f32 0.0, %v610
        %612 = vdwg.mxu0
        %v613 = vmul.f32 %v608, 2.0
        %v614 = vmul.f32 %v611, 2.0
        %v615 = vsub.f32 %v613, %v556
        %v616 = vsub.f32 %v614, %v557
        %617 = vmatpush.msra.mxu0 0.0
        %618 = vmatpush.msra.mxu0 0.0
        %619 = vmatpush.msra.mxu0 0.0
        %620 = vmatpush.msra.mxu0 0.0
        %621 = vmatpush.msra.mxu0 0.0
        %622 = vmatpush.msra.mxu0 0.0
        %623 = vmatpush.msra.mxu0 0.0
        %624 = vmatpush.msra.mxu0 0.0
        %625 = vmatpush.msra.mxu0 0.0
        %626 = vmatpush.msra.mxu0 0.0
        %627 = vmatpush.msra.mxu0 0.0
        %628 = vmatpush.msra.mxu0 0.0
        %629 = vmatpush.msra.mxu0 0.0
        %630 = vmatpush.msra.mxu0 0.0
        %631 = vmatpush.msra.mxu0 %v559
        %632 = vmatpush.msra.mxu0 %v558
        %633 = vmatmul.f32.gmra.mxu0 %v562
        %v634 = vpop.f32.mrf.mxu0
        %v635 = vadd.f32 0.0, %v634
        %636 = vmatmul.f32.gmra.mxu0 %v565
        %v637 = vpop.f32.mrf.mxu0
        %v638 = vadd.f32 0.0, %v637
        %639 = vdwg.mxu0
        %640 = vmatpush.msra.mxu0 0.0
        %641 = vmatpush.msra.mxu0 0.0
        %642 = vmatpush.msra.mxu0 0.0
        %643 = vmatpush.msra.mxu0 0.0
        %644 = vmatpush.msra.mxu0 0.0
        %645 = vmatpush.msra.mxu0 0.0
        %646 = vmatpush.msra.mxu0 0.0
        %647 = vmatpush.msra.mxu0 0.0
        %648 = vmatpush.msra.mxu0 0.0
        %649 = vmatpush.msra.mxu0 0.0
        %650 = vmatpush.msra.mxu0 0.0
        %651 = vmatpush.msra.mxu0 0.0
        %652 = vmatpush.msra.mxu0 0.0
        %653 = vmatpush.msra.mxu0 0.0
        %654 = vmatpush.msra.mxu0 %v638
        %655 = vmatpush.msra.mxu0 %v635
        %656 = vmatmul.f32.gmra.mxu0 %v562
        %v657 = vpop.f32.mrf.mxu0
        %v658 = vadd.f32 0.0, %v657
        %659 = vmatmul.f32.gmra.mxu0 %v565
        %v660 = vpop.f32.mrf.mxu0
        %v661 = vadd.f32 0.0, %v660
        %662 = vdwg.mxu0
        %v663 = vmul.f32 %v658, 2.0
        %v664 = vmul.f32 %v661, 2.0
        %v665 = vsub.f32 %v663, %v558
        %v666 = vsub.f32 %v664, %v559
        %v667 = vpack.c.bf16 %v557, %v556
        %v668 = vpack.c.bf16 %v588, %v585
        %v669 = vpack.c.bf16 %v616, %v615
        %v670 = vpack.c.bf16 %v559, %v558
        %v671 = vpack.c.bf16 %v638, %v635
        %v672 = vpack.c.bf16 %v666, %v665
        %v673 = vld [vmem:[%s9] sm:$0x1]
        %v674 = vld [vmem:[#allocation7] sm:$0xf]
        %vm675 = vcmask 64512
        %v677 = vsel %vm675, %v667, 0
        %vm679 = vcmask 1043456
        %v681 = vsel %vm679, %v674, 0
        %683 = vmatpush.bf16.msra.mxu0 0
        %684 = vmatpush.bf16.msra.mxu0 0
        %685 = vmatpush.bf16.msra.mxu0 0
        %686 = vmatpush.bf16.msra.mxu0 0
        %687 = vmatpush.bf16.msra.mxu0 0
        %688 = vmatpush.bf16.msra.mxu0 0
        %689 = vmatpush.bf16.msra.mxu0 0
        %690 = vmatpush.bf16.msra.mxu0 %v681
        %691 = vmatmul.bf16.gmra.mxu0 %v677
        %v692 = vpop.f32.mrf.mxu0
        %v693 = vadd.f32 0.0, %v692
        %v694 = vpop.f32.mrf.mxu0
        %v695 = vadd.f32 0.0, %v694
        %696 = vdwg.mxu0
        %v698 = vperm.slane %v673, 0
        %v700 = vadd.f32 %v698, %v693
        %v701 = vadd.f32 %v698, %v695
        %v702 = vld [vmem:[%s4] sm:$0xf]
        %v703 = vld [vmem:[%s4 + $0x4] sm:$0xf]
        %v704 = vld [vmem:[%s4 + $0x8] sm:$0xf]
        %v705 = vld [vmem:[%s4 + $0xc] sm:$0xf]
        %v710 = vunpack.c.l.b16 %v702
        %v711 = vunpack.c.l.b16 %v703
        %v712 = vunpack.c.l.b16 %v704
        %v713 = vunpack.c.l.b16 %v705
        %v714 = vpack.c.b16 %v711, %v710
        %v715 = vpack.c.b16 %v713, %v712
        %vm718 = vcmask 261120
        %v720 = vsel %vm718, %v670, 0
        %722 = vmatpush.bf16.msra.mxu0 0
        %723 = vmatpush.bf16.msra.mxu0 0
        %724 = vmatpush.bf16.msra.mxu0 0
        %725 = vmatpush.bf16.msra.mxu0 0
        %726 = vmatpush.bf16.msra.mxu0 0
        %727 = vmatpush.bf16.msra.mxu0 0
        %728 = vmatpush.bf16.msra.mxu0 %v715
        %729 = vmatpush.bf16.msra.mxu0 %v714
        %730 = vmatmul.bf16.gmra.mxu0 %v720
        %v731 = vpop.f32.mrf.mxu0
        %v732 = vadd.f32 0.0, %v731
        %v733 = vpop.f32.mrf.mxu0
        %v734 = vadd.f32 0.0, %v733
        %735 = vdwg.mxu0
        %v736 = vadd.f32 %v700, %v732
        %v737 = vadd.f32 %v701, %v734
        %s738 = scalar_lea.vmem [#allocation7], 4
        %v739 = vld [vmem:[%s738] sm:$0xf]
        %v741 = vsel %vm675, %v668, 0
        %v744 = vsel %vm679, %v739, 0
        %746 = vmatpush.bf16.msra.mxu0 0
        %747 = vmatpush.bf16.msra.mxu0 0
        %748 = vmatpush.bf16.msra.mxu0 0
        %749 = vmatpush.bf16.msra.mxu0 0
        %750 = vmatpush.bf16.msra.mxu0 0
        %751 = vmatpush.bf16.msra.mxu0 0
        %752 = vmatpush.bf16.msra.mxu0 0
        %753 = vmatpush.bf16.msra.mxu0 %v744
        %754 = vmatmul.bf16.gmra.mxu0 %v741
        %v755 = vpop.f32.mrf.mxu0
        %v756 = vadd.f32 0.0, %v755
        %v757 = vpop.f32.mrf.mxu0
        %v758 = vadd.f32 0.0, %v757
        %759 = vdwg.mxu0
        %v760 = vadd.f32 %v736, %v756
        %v761 = vadd.f32 %v737, %v758
        %s762 = scalar_lea.vmem %s4, 16
        %v763 = vld [vmem:[%s762] sm:$0xf]
        %v764 = vld [vmem:[%s762 + $0x4] sm:$0xf]
        %v765 = vld [vmem:[%s762 + $0x8] sm:$0xf]
        %v766 = vld [vmem:[%s762 + $0xc] sm:$0xf]
        %v771 = vunpack.c.l.b16 %v763
        %v772 = vunpack.c.l.b16 %v764
        %v773 = vunpack.c.l.b16 %v765
        %v774 = vunpack.c.l.b16 %v766
        %v775 = vpack.c.b16 %v772, %v771
        %v776 = vpack.c.b16 %v774, %v773
        %v780 = vsel %vm718, %v671, 0
        %782 = vmatpush.bf16.msra.mxu0 0
        %783 = vmatpush.bf16.msra.mxu0 0
        %784 = vmatpush.bf16.msra.mxu0 0
        %785 = vmatpush.bf16.msra.mxu0 0
        %786 = vmatpush.bf16.msra.mxu0 0
        %787 = vmatpush.bf16.msra.mxu0 0
        %788 = vmatpush.bf16.msra.mxu0 %v776
        %789 = vmatpush.bf16.msra.mxu0 %v775
        %790 = vmatmul.bf16.gmra.mxu0 %v780
        %v791 = vpop.f32.mrf.mxu0
        %v792 = vadd.f32 0.0, %v791
        %v793 = vpop.f32.mrf.mxu0
        %v794 = vadd.f32 0.0, %v793
        %795 = vdwg.mxu0
        %v796 = vadd.f32 %v760, %v792
        %v797 = vadd.f32 %v761, %v794
        %s798 = scalar_lea.vmem [#allocation7], 8
        %v799 = vld [vmem:[%s798] sm:$0xf]
        %v801 = vsel %vm675, %v669, 0
        %v804 = vsel %vm679, %v799, 0
        %806 = vmatpush.bf16.msra.mxu0 0
        %807 = vmatpush.bf16.msra.mxu0 0
        %808 = vmatpush.bf16.msra.mxu0 0
        %809 = vmatpush.bf16.msra.mxu0 0
        %810 = vmatpush.bf16.msra.mxu0 0
        %811 = vmatpush.bf16.msra.mxu0 0
        %812 = vmatpush.bf16.msra.mxu0 0
        %813 = vmatpush.bf16.msra.mxu0 %v804
        %814 = vmatmul.bf16.gmra.mxu0 %v801
        %v815 = vpop.f32.mrf.mxu0
        %v816 = vadd.f32 0.0, %v815
        %v817 = vpop.f32.mrf.mxu0
        %v818 = vadd.f32 0.0, %v817
        %819 = vdwg.mxu0
        %v820 = vadd.f32 %v796, %v816
        %v821 = vadd.f32 %v797, %v818
        %s822 = scalar_lea.vmem %s4, 32
        %v823 = vld [vmem:[%s822] sm:$0xf]
        %v824 = vld [vmem:[%s822 + $0x4] sm:$0xf]
        %v825 = vld [vmem:[%s822 + $0x8] sm:$0xf]
        %v826 = vld [vmem:[%s822 + $0xc] sm:$0xf]
        %v831 = vunpack.c.l.b16 %v823
        %v832 = vunpack.c.l.b16 %v824
        %v833 = vunpack.c.l.b16 %v825
        %v834 = vunpack.c.l.b16 %v826
        %v835 = vpack.c.b16 %v832, %v831
        %v836 = vpack.c.b16 %v834, %v833
        %v840 = vsel %vm718, %v672, 0
        %842 = vmatpush.bf16.msra.mxu0 0
        %843 = vmatpush.bf16.msra.mxu0 0
        %844 = vmatpush.bf16.msra.mxu0 0
        %845 = vmatpush.bf16.msra.mxu0 0
        %846 = vmatpush.bf16.msra.mxu0 0
        %847 = vmatpush.bf16.msra.mxu0 0
        %848 = vmatpush.bf16.msra.mxu0 %v836
        %849 = vmatpush.bf16.msra.mxu0 %v835
        %850 = vmatmul.bf16.gmra.mxu0 %v840
        %v851 = vpop.f32.mrf.mxu0
        %v852 = vadd.f32 0.0, %v851
        %v853 = vpop.f32.mrf.mxu0
        %v854 = vadd.f32 0.0, %v853
        %855 = vdwg.mxu0
        %v856 = vadd.f32 %v820, %v852
        %v857 = vadd.f32 %v821, %v854
        %v858 = vxor.u32 %v856, 2147483648
        %v859 = vxor.u32 %v857, 2147483648
        %v860 = vmul.f32 %v858, 1.442695
        %v861 = vpow.pop %v860
        %v862 = vmul.f32 %v859, 1.442695
        %v863 = vpow.pop %v862
        %v864 = vadd.f32 %v861, 1.0
        %v865 = vadd.f32 %v863, 1.0
        %v866 = vrcp.pop %v864
        %v867 = vmul.f32 %v864, %v866
        %v868 = vsub.f32 1.0, %v867
        %v869 = vmul.f32 %v866, %v868
        %v870 = vadd.f32 %v866, %v869
        %vm871 = vweird.f32 %v864
        %vm872 = vweird.f32 %v866
        %vm873 = vmor %vm871, %vm872
        %v874 = vsel %vm873, %v866, %v870
        %v875 = vand.u32 2147483647, %v864
        %vm876 = vcmp.eq.f32.partialorder %v875, 8.507059e+37
        %v877 = vand.u32 %v864, 2147483648
        %v878 = vor.u32 1.1754944e-38, %v877
        %v879 = vsel %vm876, %v878, %v874
        %v880 = vmul.f32 1.0, %v879
        %v881 = vrcp.pop %v865
        %v882 = vmul.f32 %v865, %v881
        %v883 = vsub.f32 1.0, %v882
        %v884 = vmul.f32 %v881, %v883
        %v885 = vadd.f32 %v881, %v884
        %vm886 = vweird.f32 %v865
        %vm887 = vweird.f32 %v881
        %vm888 = vmor %vm886, %vm887
        %v889 = vsel %vm888, %v881, %v885
        %v890 = vand.u32 2147483647, %v865
        %vm891 = vcmp.eq.f32.partialorder %v890, 8.507059e+37
        %v892 = vand.u32 %v865, 2147483648
        %v893 = vor.u32 1.1754944e-38, %v892
        %v894 = vsel %vm891, %v893, %v889
        %v895 = vmul.f32 1.0, %v894
        %v896 = vld [vmem:[%s10] sm:$0x1]
        %v897 = vld [vmem:[#allocation8] sm:$0xf]
        %v899 = vsel %vm679, %v897, 0
        %901 = vmatpush.bf16.msra.mxu0 0
        %902 = vmatpush.bf16.msra.mxu0 0
        %903 = vmatpush.bf16.msra.mxu0 0
        %904 = vmatpush.bf16.msra.mxu0 0
        %905 = vmatpush.bf16.msra.mxu0 0
        %906 = vmatpush.bf16.msra.mxu0 0
        %907 = vmatpush.bf16.msra.mxu0 0
        %908 = vmatpush.bf16.msra.mxu0 %v899
        %909 = vmatmul.bf16.gmra.mxu0 %v677
        %v910 = vpop.f32.mrf.mxu0
        %v911 = vadd.f32 0.0, %v910
        %v912 = vpop.f32.mrf.mxu0
        %v913 = vadd.f32 0.0, %v912
        %914 = vdwg.mxu0
        %v916 = vperm.slane %v896, 0
        %v918 = vadd.f32 %v916, %v911
        %v919 = vadd.f32 %v916, %v913
        %v920 = vld [vmem:[#allocation10] sm:$0xf]
        %v921 = vld [vmem:[#allocation10 + $0x4] sm:$0xf]
        %v922 = vld [vmem:[#allocation10 + $0x8] sm:$0xf]
        %v923 = vld [vmem:[#allocation10 + $0xc] sm:$0xf]
        %v928 = vunpack.c.l.b16 %v920
        %v929 = vunpack.c.l.b16 %v921
        %v930 = vunpack.c.l.b16 %v922
        %v931 = vunpack.c.l.b16 %v923
        %v932 = vpack.c.b16 %v929, %v928
        %v933 = vpack.c.b16 %v931, %v930
        %936 = vmatpush.bf16.msra.mxu0 0
        %937 = vmatpush.bf16.msra.mxu0 0
        %938 = vmatpush.bf16.msra.mxu0 0
        %939 = vmatpush.bf16.msra.mxu0 0
        %940 = vmatpush.bf16.msra.mxu0 0
        %941 = vmatpush.bf16.msra.mxu0 0
        %942 = vmatpush.bf16.msra.mxu0 %v933
        %943 = vmatpush.bf16.msra.mxu0 %v932
        %944 = vmatmul.bf16.gmra.mxu0 %v720
        %v945 = vpop.f32.mrf.mxu0
        %v946 = vadd.f32 0.0, %v945
        %v947 = vpop.f32.mrf.mxu0
        %v948 = vadd.f32 0.0, %v947
        %949 = vdwg.mxu0
        %v950 = vadd.f32 %v918, %v946
        %v951 = vadd.f32 %v919, %v948
        %s952 = scalar_lea.vmem [#allocation8], 4
        %v953 = vld [vmem:[%s952] sm:$0xf]
        %v955 = vsel %vm679, %v953, 0
        %957 = vmatpush.bf16.msra.mxu0 0
        %958 = vmatpush.bf16.msra.mxu0 0
        %959 = vmatpush.bf16.msra.mxu0 0
        %960 = vmatpush.bf16.msra.mxu0 0
        %961 = vmatpush.bf16.msra.mxu0 0
        %962 = vmatpush.bf16.msra.mxu0 0
        %963 = vmatpush.bf16.msra.mxu0 0
        %964 = vmatpush.bf16.msra.mxu0 %v955
        %965 = vmatmul.bf16.gmra.mxu0 %v741
        %v966 = vpop.f32.mrf.mxu0
        %v967 = vadd.f32 0.0, %v966
        %v968 = vpop.f32.mrf.mxu0
        %v969 = vadd.f32 0.0, %v968
        %970 = vdwg.mxu0
        %v971 = vadd.f32 %v950, %v967
        %v972 = vadd.f32 %v951, %v969
        %s973 = scalar_lea.vmem [#allocation10], 16
        %v974 = vld [vmem:[%s973] sm:$0xf]
        %v975 = vld [vmem:[%s973 + $0x4] sm:$0xf]
        %v976 = vld [vmem:[%s973 + $0x8] sm:$0xf]
        %v977 = vld [vmem:[%s973 + $0xc] sm:$0xf]
        %v982 = vunpack.c.l.b16 %v974
        %v983 = vunpack.c.l.b16 %v975
        %v984 = vunpack.c.l.b16 %v976
        %v985 = vunpack.c.l.b16 %v977
        %v986 = vpack.c.b16 %v983, %v982
        %v987 = vpack.c.b16 %v985, %v984
        %990 = vmatpush.bf16.msra.mxu0 0
        %991 = vmatpush.bf16.msra.mxu0 0
        %992 = vmatpush.bf16.msra.mxu0 0
        %993 = vmatpush.bf16.msra.mxu0 0
        %994 = vmatpush.bf16.msra.mxu0 0
        %995 = vmatpush.bf16.msra.mxu0 0
        %996 = vmatpush.bf16.msra.mxu0 %v987
        %997 = vmatpush.bf16.msra.mxu0 %v986
        %998 = vmatmul.bf16.gmra.mxu0 %v780
        %v999 = vpop.f32.mrf.mxu0
        %v1000 = vadd.f32 0.0, %v999
        %v1001 = vpop.f32.mrf.mxu0
        %v1002 = vadd.f32 0.0, %v1001
        %1003 = vdwg.mxu0
        %v1004 = vadd.f32 %v971, %v1000
        %v1005 = vadd.f32 %v972, %v1002
        %s1006 = scalar_lea.vmem [#allocation8], 8
        %v1007 = vld [vmem:[%s1006] sm:$0xf]
        %v1009 = vsel %vm679, %v1007, 0
        %1011 = vmatpush.bf16.msra.mxu0 0
        %1012 = vmatpush.bf16.msra.mxu0 0
        %1013 = vmatpush.bf16.msra.mxu0 0
        %1014 = vmatpush.bf16.msra.mxu0 0
        %1015 = vmatpush.bf16.msra.mxu0 0
        %1016 = vmatpush.bf16.msra.mxu0 0
        %1017 = vmatpush.bf16.msra.mxu0 0
        %1018 = vmatpush.bf16.msra.mxu0 %v1009
        %1019 = vmatmul.bf16.gmra.mxu0 %v801
        %v1020 = vpop.f32.mrf.mxu0
        %v1021 = vadd.f32 0.0, %v1020
        %v1022 = vpop.f32.mrf.mxu0
        %v1023 = vadd.f32 0.0, %v1022
        %1024 = vdwg.mxu0
        %v1025 = vadd.f32 %v1004, %v1021
        %v1026 = vadd.f32 %v1005, %v1023
        %s1027 = scalar_lea.vmem [#allocation10], 32
        %v1028 = vld [vmem:[%s1027] sm:$0xf]
        %v1029 = vld [vmem:[%s1027 + $0x4] sm:$0xf]
        %v1030 = vld [vmem:[%s1027 + $0x8] sm:$0xf]
        %v1031 = vld [vmem:[%s1027 + $0xc] sm:$0xf]
        %v1036 = vunpack.c.l.b16 %v1028
        %v1037 = vunpack.c.l.b16 %v1029
        %v1038 = vunpack.c.l.b16 %v1030
        %v1039 = vunpack.c.l.b16 %v1031
        %v1040 = vpack.c.b16 %v1037, %v1036
        %v1041 = vpack.c.b16 %v1039, %v1038
        %1044 = vmatpush.bf16.msra.mxu0 0
        %1045 = vmatpush.bf16.msra.mxu0 0
        %1046 = vmatpush.bf16.msra.mxu0 0
        %1047 = vmatpush.bf16.msra.mxu0 0
        %1048 = vmatpush.bf16.msra.mxu0 0
        %1049 = vmatpush.bf16.msra.mxu0 0
        %1050 = vmatpush.bf16.msra.mxu0 %v1041
        %1051 = vmatpush.bf16.msra.mxu0 %v1040
        %1052 = vmatmul.bf16.gmra.mxu0 %v840
        %v1053 = vpop.f32.mrf.mxu0
        %v1054 = vadd.f32 0.0, %v1053
        %v1055 = vpop.f32.mrf.mxu0
        %v1056 = vadd.f32 0.0, %v1055
        %1057 = vdwg.mxu0
        %v1058 = vadd.f32 %v1025, %v1054
        %v1059 = vadd.f32 %v1026, %v1056
        %v1060 = vxor.u32 %v1058, 2147483648
        %v1061 = vxor.u32 %v1059, 2147483648
        %v1062 = vmul.f32 %v1060, 1.442695
        %v1063 = vpow.pop %v1062
        %v1064 = vmul.f32 %v1061, 1.442695
        %v1065 = vpow.pop %v1064
        %v1066 = vadd.f32 %v1063, 1.0
        %v1067 = vadd.f32 %v1065, 1.0
        %v1068 = vrcp.pop %v1066
        %v1069 = vmul.f32 %v1066, %v1068
        %v1070 = vsub.f32 1.0, %v1069
        %v1071 = vmul.f32 %v1068, %v1070
        %v1072 = vadd.f32 %v1068, %v1071
        %vm1073 = vweird.f32 %v1066
        %vm1074 = vweird.f32 %v1068
        %vm1075 = vmor %vm1073, %vm1074
        %v1076 = vsel %vm1075, %v1068, %v1072
        %v1077 = vand.u32 2147483647, %v1066
        %vm1078 = vcmp.eq.f32.partialorder %v1077, 8.507059e+37
        %v1079 = vand.u32 %v1066, 2147483648
        %v1080 = vor.u32 1.1754944e-38, %v1079
        %v1081 = vsel %vm1078, %v1080, %v1076
        %v1082 = vmul.f32 1.0, %v1081
        %v1083 = vrcp.pop %v1067
        %v1084 = vmul.f32 %v1067, %v1083
        %v1085 = vsub.f32 1.0, %v1084
        %v1086 = vmul.f32 %v1083, %v1085
        %v1087 = vadd.f32 %v1083, %v1086
        %vm1088 = vweird.f32 %v1067
        %vm1089 = vweird.f32 %v1083
        %vm1090 = vmor %vm1088, %vm1089
        %v1091 = vsel %vm1090, %v1083, %v1087
        %v1092 = vand.u32 2147483647, %v1067
        %vm1093 = vcmp.eq.f32.partialorder %v1092, 8.507059e+37
        %v1094 = vand.u32 %v1067, 2147483648
        %v1095 = vor.u32 1.1754944e-38, %v1094
        %v1096 = vsel %vm1093, %v1095, %v1091
        %v1097 = vmul.f32 1.0, %v1096
        %v1098 = vmul.f32 %v880, %v558
        %v1099 = vmul.f32 %v895, %v559
        %1100 = vmatpush.msra.mxu0 0.0
        %1101 = vmatpush.msra.mxu0 0.0
        %1102 = vmatpush.msra.mxu0 0.0
        %1103 = vmatpush.msra.mxu0 0.0
        %1104 = vmatpush.msra.mxu0 0.0
        %1105 = vmatpush.msra.mxu0 0.0
        %1106 = vmatpush.msra.mxu0 0.0
        %1107 = vmatpush.msra.mxu0 0.0
        %1108 = vmatpush.msra.mxu0 0.0
        %1109 = vmatpush.msra.mxu0 0.0
        %1110 = vmatpush.msra.mxu0 0.0
        %1111 = vmatpush.msra.mxu0 0.0
        %1112 = vmatpush.msra.mxu0 0.0
        %1113 = vmatpush.msra.mxu0 0.0
        %1114 = vmatpush.msra.mxu0 %v1099
        %1115 = vmatpush.msra.mxu0 %v1098
        %1116 = vmatmul.f32.gmra.mxu0 %v562
        %v1117 = vpop.f32.mrf.mxu0
        %v1118 = vadd.f32 0.0, %v1117
        %1119 = vmatmul.f32.gmra.mxu0 %v565
        %v1120 = vpop.f32.mrf.mxu0
        %v1121 = vadd.f32 0.0, %v1120
        %1122 = vdwg.mxu0
        %1123 = vmatpush.msra.mxu0 0.0
        %1124 = vmatpush.msra.mxu0 0.0
        %1125 = vmatpush.msra.mxu0 0.0
        %1126 = vmatpush.msra.mxu0 0.0
        %1127 = vmatpush.msra.mxu0 0.0
        %1128 = vmatpush.msra.mxu0 0.0
        %1129 = vmatpush.msra.mxu0 0.0
        %1130 = vmatpush.msra.mxu0 0.0
        %1131 = vmatpush.msra.mxu0 0.0
        %1132 = vmatpush.msra.mxu0 0.0
        %1133 = vmatpush.msra.mxu0 0.0
        %1134 = vmatpush.msra.mxu0 0.0
        %1135 = vmatpush.msra.mxu0 0.0
        %1136 = vmatpush.msra.mxu0 0.0
        %1137 = vmatpush.msra.mxu0 %v1121
        %1138 = vmatpush.msra.mxu0 %v1118
        %1139 = vmatmul.f32.gmra.mxu0 %v562
        %v1140 = vpop.f32.mrf.mxu0
        %v1141 = vadd.f32 0.0, %v1140
        %1142 = vmatmul.f32.gmra.mxu0 %v565
        %v1143 = vpop.f32.mrf.mxu0
        %v1144 = vadd.f32 0.0, %v1143
        %1145 = vdwg.mxu0
        %v1146 = vmul.f32 %v1141, 2.0
        %v1147 = vmul.f32 %v1144, 2.0
        %v1148 = vsub.f32 %v1146, %v1098
        %v1149 = vsub.f32 %v1147, %v1099
        %v1150 = vpack.c.bf16 %v1099, %v1098
        %v1151 = vpack.c.bf16 %v1121, %v1118
        %v1152 = vpack.c.bf16 %v1149, %v1148
        %v1153 = vld [vmem:[%s11] sm:$0x1]
        %v1154 = vld [vmem:[#allocation11] sm:$0xf]
        %v1156 = vsel %vm679, %v1154, 0
        %1158 = vmatpush.bf16.msra.mxu0 0
        %1159 = vmatpush.bf16.msra.mxu0 0
        %1160 = vmatpush.bf16.msra.mxu0 0
        %1161 = vmatpush.bf16.msra.mxu0 0
        %1162 = vmatpush.bf16.msra.mxu0 0
        %1163 = vmatpush.bf16.msra.mxu0 0
        %1164 = vmatpush.bf16.msra.mxu0 0
        %1165 = vmatpush.bf16.msra.mxu0 %v1156
        %1166 = vmatmul.bf16.gmra.mxu0 %v677
        %v1167 = vpop.f32.mrf.mxu0
        %v1168 = vadd.f32 0.0, %v1167
        %v1169 = vpop.f32.mrf.mxu0
        %v1170 = vadd.f32 0.0, %v1169
        %1171 = vdwg.mxu0
        %v1173 = vperm.slane %v1153, 0
        %v1175 = vadd.f32 %v1173, %v1168
        %v1176 = vadd.f32 %v1173, %v1170
        %v1177 = vld [vmem:[#allocation13] sm:$0xf]
        %v1178 = vld [vmem:[#allocation13 + $0x4] sm:$0xf]
        %v1179 = vld [vmem:[#allocation13 + $0x8] sm:$0xf]
        %v1180 = vld [vmem:[#allocation13 + $0xc] sm:$0xf]
        %v1185 = vunpack.c.l.b16 %v1177
        %v1186 = vunpack.c.l.b16 %v1178
        %v1187 = vunpack.c.l.b16 %v1179
        %v1188 = vunpack.c.l.b16 %v1180
        %v1189 = vpack.c.b16 %v1186, %v1185
        %v1190 = vpack.c.b16 %v1188, %v1187
        %v1194 = vsel %vm718, %v1150, 0
        %1196 = vmatpush.bf16.msra.mxu0 0
        %1197 = vmatpush.bf16.msra.mxu0 0
        %1198 = vmatpush.bf16.msra.mxu0 0
        %1199 = vmatpush.bf16.msra.mxu0 0
        %1200 = vmatpush.bf16.msra.mxu0 0
        %1201 = vmatpush.bf16.msra.mxu0 0
        %1202 = vmatpush.bf16.msra.mxu0 %v1190
        %1203 = vmatpush.bf16.msra.mxu0 %v1189
        %1204 = vmatmul.bf16.gmra.mxu0 %v1194
        %v1205 = vpop.f32.mrf.mxu0
        %v1206 = vadd.f32 0.0, %v1205
        %v1207 = vpop.f32.mrf.mxu0
        %v1208 = vadd.f32 0.0, %v1207
        %1209 = vdwg.mxu0
        %v1210 = vadd.f32 %v1175, %v1206
        %v1211 = vadd.f32 %v1176, %v1208
        %s1212 = scalar_lea.vmem [#allocation11], 4
        %v1213 = vld [vmem:[%s1212] sm:$0xf]
        %v1215 = vsel %vm679, %v1213, 0
        %1217 = vmatpush.bf16.msra.mxu0 0
        %1218 = vmatpush.bf16.msra.mxu0 0
        %1219 = vmatpush.bf16.msra.mxu0 0
        %1220 = vmatpush.bf16.msra.mxu0 0
        %1221 = vmatpush.bf16.msra.mxu0 0
        %1222 = vmatpush.bf16.msra.mxu0 0
        %1223 = vmatpush.bf16.msra.mxu0 0
        %1224 = vmatpush.bf16.msra.mxu0 %v1215
        %1225 = vmatmul.bf16.gmra.mxu0 %v741
        %v1226 = vpop.f32.mrf.mxu0
        %v1227 = vadd.f32 0.0, %v1226
        %v1228 = vpop.f32.mrf.mxu0
        %v1229 = vadd.f32 0.0, %v1228
        %1230 = vdwg.mxu0
        %v1231 = vadd.f32 %v1210, %v1227
        %v1232 = vadd.f32 %v1211, %v1229
        %s1233 = scalar_lea.vmem [#allocation13], 16
        %v1234 = vld [vmem:[%s1233] sm:$0xf]
        %v1235 = vld [vmem:[%s1233 + $0x4] sm:$0xf]
        %v1236 = vld [vmem:[%s1233 + $0x8] sm:$0xf]
        %v1237 = vld [vmem:[%s1233 + $0xc] sm:$0xf]
        %v1242 = vunpack.c.l.b16 %v1234
        %v1243 = vunpack.c.l.b16 %v1235
        %v1244 = vunpack.c.l.b16 %v1236
        %v1245 = vunpack.c.l.b16 %v1237
        %v1246 = vpack.c.b16 %v1243, %v1242
        %v1247 = vpack.c.b16 %v1245, %v1244
        %v1251 = vsel %vm718, %v1151, 0
        %1253 = vmatpush.bf16.msra.mxu0 0
        %1254 = vmatpush.bf16.msra.mxu0 0
        %1255 = vmatpush.bf16.msra.mxu0 0
        %1256 = vmatpush.bf16.msra.mxu0 0
        %1257 = vmatpush.bf16.msra.mxu0 0
        %1258 = vmatpush.bf16.msra.mxu0 0
        %1259 = vmatpush.bf16.msra.mxu0 %v1247
        %1260 = vmatpush.bf16.msra.mxu0 %v1246
        %1261 = vmatmul.bf16.gmra.mxu0 %v1251
        %v1262 = vpop.f32.mrf.mxu0
        %v1263 = vadd.f32 0.0, %v1262
        %v1264 = vpop.f32.mrf.mxu0
        %v1265 = vadd.f32 0.0, %v1264
        %1266 = vdwg.mxu0
        %v1267 = vadd.f32 %v1231, %v1263
        %v1268 = vadd.f32 %v1232, %v1265
        %s1269 = scalar_lea.vmem [#allocation11], 8
        %v1270 = vld [vmem:[%s1269] sm:$0xf]
        %v1272 = vsel %vm679, %v1270, 0
        %1274 = vmatpush.bf16.msra.mxu0 0
        %1275 = vmatpush.bf16.msra.mxu0 0
        %1276 = vmatpush.bf16.msra.mxu0 0
        %1277 = vmatpush.bf16.msra.mxu0 0
        %1278 = vmatpush.bf16.msra.mxu0 0
        %1279 = vmatpush.bf16.msra.mxu0 0
        %1280 = vmatpush.bf16.msra.mxu0 0
        %1281 = vmatpush.bf16.msra.mxu0 %v1272
        %1282 = vmatmul.bf16.gmra.mxu0 %v801
        %v1283 = vpop.f32.mrf.mxu0
        %v1284 = vadd.f32 0.0, %v1283
        %v1285 = vpop.f32.mrf.mxu0
        %v1286 = vadd.f32 0.0, %v1285
        %1287 = vdwg.mxu0
        %v1288 = vadd.f32 %v1267, %v1284
        %v1289 = vadd.f32 %v1268, %v1286
        %s1290 = scalar_lea.vmem [#allocation13], 32
        %v1291 = vld [vmem:[%s1290] sm:$0xf]
        %v1292 = vld [vmem:[%s1290 + $0x4] sm:$0xf]
        %v1293 = vld [vmem:[%s1290 + $0x8] sm:$0xf]
        %v1294 = vld [vmem:[%s1290 + $0xc] sm:$0xf]
        %v1299 = vunpack.c.l.b16 %v1291
        %v1300 = vunpack.c.l.b16 %v1292
        %v1301 = vunpack.c.l.b16 %v1293
        %v1302 = vunpack.c.l.b16 %v1294
        %v1303 = vpack.c.b16 %v1300, %v1299
        %v1304 = vpack.c.b16 %v1302, %v1301
        %v1308 = vsel %vm718, %v1152, 0
        %1310 = vmatpush.bf16.msra.mxu0 0
        %1311 = vmatpush.bf16.msra.mxu0 0
        %1312 = vmatpush.bf16.msra.mxu0 0
        %1313 = vmatpush.bf16.msra.mxu0 0
        %1314 = vmatpush.bf16.msra.mxu0 0
        %1315 = vmatpush.bf16.msra.mxu0 0
        %1316 = vmatpush.bf16.msra.mxu0 %v1304
        %1317 = vmatpush.bf16.msra.mxu0 %v1303
        %1318 = vmatmul.bf16.gmra.mxu0 %v1308
        %v1319 = vpop.f32.mrf.mxu0
        %v1320 = vadd.f32 0.0, %v1319
        %v1321 = vpop.f32.mrf.mxu0
        %v1322 = vadd.f32 0.0, %v1321
        %1323 = vdwg.mxu0
        %v1324 = vadd.f32 %v1288, %v1320
        %v1325 = vadd.f32 %v1289, %v1322
        %v1326 = vtanh.pop %v1324
        %v1327 = vtanh.pop %v1325
        %v1328 = vmul.f32 %v1082, %v558
        %v1329 = vmul.f32 %v1097, %v559
        %v1330 = vsub.f32 1.0, %v1082
        %v1331 = vsub.f32 1.0, %v1097
        %v1332 = vmul.f32 %v1330, %v1326
        %v1333 = vmul.f32 %v1331, %v1327
        %v1334 = vadd.f32 %v1328, %v1332
        %v1335 = vadd.f32 %v1329, %v1333
        %1336 = vst.msk [vmem:[%s547] sm:$0xff] %vm718, %v1334
        %1337 = vst.msk [vmem:[%s547 + $0x8] sm:$0xff] %vm718, %v1335
        %s1338 = sand.u32 %s302, 1
        %s1339 = scalar_lea.sflag [#allocation4], %s1338
        %s1340 = sand.u32 %s302, 1
        %s1341 = smul.addr %s1340, 16
        %s1342 = scalar_lea.vmem [#allocation14], %s1341
        // Predicated region
        $region97: #{tpu_custom_call.1} parent=67 // pred_check
          %p1343 = pneg %p312
        $region98: #{tpu_custom_call.1} parent=67 // pred_check_branch
          %1345 = sbr.rel (%p1343) target = $region100
        $region99: #{tpu_custom_call.1} parent=67 // pred_region
          %1347 = vsyncadd %s1339, 0
          %s1348 = smul.addr %s32, 2
          %s1349 = smul.addr %s1348, 8
          %s1350 = scalar_lea.hbm %s12, %s1349
          %s1351 = sshll.u32 %s1342, 4
          %s1352 = int_to_ptr.vmem [resolvable:$true] %s1351
          %s1353 = sshll.u32 %s1350, 4
          %s1354 = int_to_ptr.hbm [resolvable:$true] %s1353
          %1359 = dma.vmem_to_hbm [thread:$0]  %s1352, 256, %s1354, %s1339, 128, 128, 8
        $region100: #{tpu_custom_call.1} parent=67 // pred_fallthru
          _
      $region68: #{tpu_custom_call.1} parent=5 // pred_fallthru
        _
      %p1360 = scmp.le.s32.totalorder 2, %s27
      // Predicated region
      $region101: #{tpu_custom_call.1} parent=5 // pred_check
        %p1361 = pneg %p1360
      $region102: #{tpu_custom_call.1} parent=5 // pred_check_branch
        %1363 = sbr.rel (%p1361) target = $region104
      $region103: #{tpu_custom_call.1} parent=5 // pred_region
        %s1364 = ssub.s32 %s27, 2
        // Predicated region
        $region105: #{tpu_custom_call.1} parent=103 // pred_check
          %p1365 = pneg %p318
        $region106: #{tpu_custom_call.1} parent=103 // pred_check_branch
          %1367 = sbr.rel (%p1365) target = $region108
        $region107: #{tpu_custom_call.1} parent=103 // pred_region
          %s1368 = sand.u32 %s303, 1
          %s1369 = scalar_lea.sflag [#allocation4], %s1368
          %s1370 = sand.u32 %s303, 1
          %s1371 = smul.addr %s1370, 16
          %s1372 = scalar_lea.vmem [#allocation14], %s1371
          %1374 = dma.done %s1369, 256
        $region108: #{tpu_custom_call.1} parent=103 // pred_fallthru
          _
      $region104: #{tpu_custom_call.1} parent=5 // pred_fallthru
        _
    $region6: #{tpu_custom_call.1} parent=1 // loop_footer
      %s31 = sadd.s32 1, %s27
    $region7: #{tpu_custom_call.1} parent=1 // loop_footer_branch
      %26 = sbr.rel target = $region3
    $region8: #{tpu_custom_call.1} parent=1 // loop_exit
      _
    %1375 = vsyncpa [#allocation3], 1
    %s1376 = scalar_lea.sflag [#allocation3], 1
    %1377 = vsyncpa %s1376, 1
    %1378 = vsyncpa [#allocation6], 1
    %s1379 = scalar_lea.sflag [#allocation6], 1
    %1380 = vsyncpa %s1379, 1
    %1381 = vsyncpa [#allocation9], 1
    %1382 = vsyncpa [#allocation12], 1
    %1383 = vsyncpa [#allocation4], 1
    %s1384 = scalar_lea.sflag [#allocation4], 1
    %1385 = vsyncpa %s1384, 1

</llo_original>
